<compile_context>
chip_gen: v5e
topology: v5e:2x2
jax: 0.10.0
libtpu: 0.0.40
codegen_flags: <defaults>
</compile_context>

<pallas_src>
import jax
import jax.numpy as jnp
from jax.experimental import pallas as pl
from jax.experimental.pallas import tpu as pltpu

D_IN, D_HIDDEN, D_OUT = 512, 1024, 512


def mlp_kernel(x_ref, w1_ref, b1_ref, w2_ref, b2_ref, o_ref):
    """Fused Linear -> ReLU -> Linear on one batch tile."""
    x = x_ref[...]
    # First matmul: bf16 x bf16 -> f32 accumulation on the MXU.
    h = jnp.dot(x, w1_ref[...], preferred_element_type=jnp.float32) + b1_ref[...]
    h = jnp.maximum(h, 0.0)              # bias + ReLU in f32 on the VPU (v5e-safe)
    h = h.astype(w2_ref.dtype)           # feed the second MXU pass in bf16
    y = jnp.dot(h, w2_ref[...], preferred_element_type=jnp.float32) + b2_ref[...]
    o_ref[...] = y.astype(o_ref.dtype)


def _choose_tile_b(batch):
    """Batch tile: big tiles for throughput, >=2 grid steps whenever possible."""
    if batch >= 2048:
        return 512          # amortize per-step overhead, near HBM roofline
    if batch >= 512:
        return 256
    if batch >= 256:
        return 128          # >= 2 steps -> both v7x TensorCores get work
    # Small / latency-bound batches: a single block.  The block's second-minor
    # dim must be a multiple of 8 or equal the full batch dimension.
    if batch % 8 == 0:
        return batch
    if batch > 128:
        return 128          # ragged last block handled by Pallas masking
    return batch            # block == full array dim (always legal)


def mlp_forward(x, params, *, compute_dtype=jnp.bfloat16, tile_b=None):
    """x: (B, 512) -> (B, 512) float32.  params = (w1, b1, w2, b2), weights (in, out)."""
    w1, b1, w2, b2 = params
    batch, d_in = x.shape
    assert d_in == D_IN and w1.shape == (D_IN, D_HIDDEN) and w2.shape == (D_HIDDEN, D_OUT)

    # MXU inputs in compute_dtype (bf16 by default); biases + accumulation stay f32.
    x = x.astype(compute_dtype)
    w1 = w1.astype(compute_dtype)
    w2 = w2.astype(compute_dtype)
    b1 = b1.astype(jnp.float32)
    b2 = b2.astype(jnp.float32)

    tb = tile_b if tile_b is not None else _choose_tile_b(batch)
    grid = (pl.cdiv(batch, tb),)

    itemsize = jnp.dtype(compute_dtype).itemsize
    cost = pl.CostEstimate(
        flops=2 * batch * (D_IN * D_HIDDEN + D_HIDDEN * D_OUT),
        transcendentals=0,
        bytes_accessed=(batch * D_IN * itemsize                              # x
                        + (D_IN * D_HIDDEN + D_HIDDEN * D_OUT) * itemsize    # weights
                        + (D_HIDDEN + D_OUT) * 4                             # biases
                        + batch * D_OUT * 4),                                # output
    )

    def resident(shape):
        # Grid-invariant operand (weights / biases): same block every step,
        # so it stays resident in VMEM across the whole grid.
        return pl.BlockSpec(shape, lambda i: (0,) * len(shape))

    return pl.pallas_call(
        mlp_kernel,
        out_shape=jax.ShapeDtypeStruct((batch, D_OUT), jnp.float32),
        grid=grid,
        in_specs=[
            pl.BlockSpec((tb, D_IN), lambda i: (i, 0)),   # x tile
            resident((D_IN, D_HIDDEN)),                   # w1
            resident((1, D_HIDDEN)),                      # b1
            resident((D_HIDDEN, D_OUT)),                  # w2
            resident((1, D_OUT)),                         # b2
        ],
        out_specs=pl.BlockSpec((tb, D_OUT), lambda i: (i, 0)),
        compiler_params=pltpu.CompilerParams(
            dimension_semantics=("parallel",),
            vmem_limit_bytes=48 << 20,
        ),
        cost_estimate=cost,
    )(x, w1, b1, w2, b2)


def init_params(key):
    """PyTorch nn.Linear default init: U(-1/sqrt(fan_in), +1/sqrt(fan_in)).

    Weights stored (in_features, out_features) so the kernel computes x @ W + b,
    which matches PyTorch's x @ W.T + b with W pre-transposed.
    """
    dims = [(D_IN, D_HIDDEN), (D_HIDDEN, D_OUT)]
    keys = jax.random.split(key, 2 * len(dims))
    params = []
    for i, (fan_in, fan_out) in enumerate(dims):
        bound = 1.0 / float(fan_in) ** 0.5
        w = jax.random.uniform(keys[2 * i], (fan_in, fan_out),
                               minval=-bound, maxval=bound, dtype=jnp.float32)
        b = jax.random.uniform(keys[2 * i + 1], (1, fan_out),
                               minval=-bound, maxval=bound, dtype=jnp.float32)
        params += [w, b]
    return tuple(params)


def mlp_reference(x, params, compute_dtype=jnp.float32):
    """Pure-JAX reference with the same dtype policy as the kernel."""
    w1, b1, w2, b2 = params
    x = x.astype(compute_dtype)
    h = jnp.dot(x, w1.astype(compute_dtype),
                preferred_element_type=jnp.float32) + b1.astype(jnp.float32)
    h = jnp.maximum(h, 0.0).astype(compute_dtype)
    return jnp.dot(h, w2.astype(compute_dtype),
                   preferred_element_type=jnp.float32) + b2.astype(jnp.float32)


if __name__ == "__main__":
    key = jax.random.PRNGKey(0)
    k_p, k1, k2 = jax.random.split(key, 3)
    params = init_params(k_p)

    # 1) Small batch, exact f32 path: tight correctness check vs reference.
    x8 = jax.random.normal(k1, (8, D_IN), dtype=jnp.float32)
    out8 = jax.block_until_ready(mlp_forward(x8, params, compute_dtype=jnp.float32))
    assert out8.shape == (8, D_OUT)
    assert jnp.allclose(out8, mlp_reference(x8, params, jnp.float32),
                        atol=1e-4, rtol=1e-4), "f32 small-batch mismatch"

    # 2) Small batch, default bf16-MXU path (weight-streaming-bound regime).
    out8_bf = jax.block_until_ready(mlp_forward(x8, params))
    assert jnp.allclose(out8_bf, mlp_reference(x8, params, jnp.bfloat16),
                        atol=2e-2, rtol=2e-2), "bf16 small-batch mismatch"

    # 3) Tiled batch: tile_b=128, 3 grid steps ("parallel" -> v7x 2-TC sharding),
    #    ragged last tile handled by Pallas's masked block load/store.
    x_big = jax.random.normal(k2, (272, D_IN), dtype=jnp.float32)
    out_big = jax.block_until_ready(mlp_forward(x_big, params))
    assert out_big.shape == (272, D_OUT)
    assert jnp.allclose(out_big, mlp_reference(x_big, params, jnp.bfloat16),
                        atol=2e-2, rtol=2e-2), "bf16 tiled-batch mismatch"

    print("KERNEL_OK")
</pallas_src>

<mosaic_0001>
module attributes {stable_mosaic.version = 11 : i64} {
  func.func @mlp_kernel(%arg0: i32, %arg1: memref<8x512xf32, #tpu.memory_space<vmem>>, %arg2: memref<512x1024xf32, #tpu.memory_space<vmem>>, %arg3: memref<1x1024xf32, #tpu.memory_space<vmem>>, %arg4: memref<1024x512xf32, #tpu.memory_space<vmem>>, %arg5: memref<1x512xf32, #tpu.memory_space<vmem>>, %arg6: memref<8x512xf32, #tpu.memory_space<vmem>>) attributes {dimension_semantics = [#tpu.dimension_semantics<parallel>], iteration_bounds = array<i64: 1>, scalar_prefetch = 0 : i64, scratch_operands = 0 : i64, tpu.core_type = #tpu.core_type<tc>, window_params = [{transform_indices = @transform_0, window_bounds = array<i64: 8, 512>}, {pipeline_mode = #tpu.pipeline_mode<synchronous>, transform_indices = @transform_1, window_bounds = array<i64: 512, 1024>}, {pipeline_mode = #tpu.pipeline_mode<synchronous>, transform_indices = @transform_2, window_bounds = array<i64: 1, 1024>}, {pipeline_mode = #tpu.pipeline_mode<synchronous>, transform_indices = @transform_3, window_bounds = array<i64: 1024, 512>}, {pipeline_mode = #tpu.pipeline_mode<synchronous>, transform_indices = @transform_4, window_bounds = array<i64: 1, 512>}, {transform_indices = @transform_5, window_bounds = array<i64: 8, 512>}]} {
    %c0 = arith.constant 0 : index
    %c0_0 = arith.constant 0 : index
    %0 = vector.load %arg1[%c0, %c0_0] : memref<8x512xf32, #tpu.memory_space<vmem>>, vector<8x512xf32>
    %c0_1 = arith.constant 0 : index
    %c0_2 = arith.constant 0 : index
    %1 = vector.load %arg2[%c0_1, %c0_2] : memref<512x1024xf32, #tpu.memory_space<vmem>>, vector<512x1024xf32>
    %cst = arith.constant dense<0.000000e+00> : vector<8x1024xf32>
    %2 = tpu.matmul %0, %1, %cst {dimension_numbers = #tpu.dot_dimension_numbers<[1], [0], [0], [1], [0, 0, 1, 1], [], []>} : vector<8x512xf32>, vector<512x1024xf32>, vector<8x1024xf32> -> vector<8x1024xf32>
    %c0_3 = arith.constant 0 : index
    %c0_4 = arith.constant 0 : index
    %3 = vector.load %arg3[%c0_3, %c0_4] : memref<1x1024xf32, #tpu.memory_space<vmem>>, vector<1x1024xf32>
    %4 = vector.broadcast %3 : vector<1x1024xf32> to vector<8x1024xf32>
    %5 = arith.addf %2, %4 : vector<8x1024xf32>
    %cst_5 = arith.constant 0.000000e+00 : f32
    %6 = vector.broadcast %cst_5 : f32 to vector<8x1024xf32>
    %7 = arith.maximumf %5, %6 : vector<8x1024xf32>
    %c0_6 = arith.constant 0 : index
    %c0_7 = arith.constant 0 : index
    %8 = vector.load %arg4[%c0_6, %c0_7] : memref<1024x512xf32, #tpu.memory_space<vmem>>, vector<1024x512xf32>
    %cst_8 = arith.constant dense<0.000000e+00> : vector<8x512xf32>
    %9 = tpu.matmul %7, %8, %cst_8 {dimension_numbers = #tpu.dot_dimension_numbers<[1], [0], [0], [1], [0, 0, 1, 1], [], []>} : vector<8x1024xf32>, vector<1024x512xf32>, vector<8x512xf32> -> vector<8x512xf32>
    %c0_9 = arith.constant 0 : index
    %c0_10 = arith.constant 0 : index
    %10 = vector.load %arg5[%c0_9, %c0_10] : memref<1x512xf32, #tpu.memory_space<vmem>>, vector<1x512xf32>
    %11 = vector.broadcast %10 : vector<1x512xf32> to vector<8x512xf32>
    %12 = arith.addf %9, %11 : vector<8x512xf32>
    %c0_11 = arith.constant 0 : index
    %c0_12 = arith.constant 0 : index
    %13 = vector.load %arg6[%c0_11, %c0_12] : memref<8x512xf32, #tpu.memory_space<vmem>>, vector<8x512xf32>
    tpu.vector_store %arg6[%c0_11, %c0_12], %12 {strides = array<i32>} : memref<8x512xf32, #tpu.memory_space<vmem>>, vector<8x512xf32>,
    return
  }
  func.func @transform_0(%arg0: i32) -> (i32, i32) {
    %c0_i32 = arith.constant 0 : i32
    %c0_i32_0 = arith.constant 0 : i32
    return %arg0, %c0_i32 : i32, i32
  }
  func.func @transform_1(%arg0: i32) -> (i32, i32) {
    %c0_i32 = arith.constant 0 : i32
    %c0_i32_0 = arith.constant 0 : i32
    %c0_i32_1 = arith.constant 0 : i32
    return %c0_i32, %c0_i32_0 : i32, i32
  }
  func.func @transform_2(%arg0: i32) -> (i32, i32) {
    %c0_i32 = arith.constant 0 : i32
    %c0_i32_0 = arith.constant 0 : i32
    %c0_i32_1 = arith.constant 0 : i32
    return %c0_i32, %c0_i32_0 : i32, i32
  }
  func.func @transform_3(%arg0: i32) -> (i32, i32) {
    %c0_i32 = arith.constant 0 : i32
    %c0_i32_0 = arith.constant 0 : i32
    %c0_i32_1 = arith.constant 0 : i32
    return %c0_i32, %c0_i32_0 : i32, i32
  }
  func.func @transform_4(%arg0: i32) -> (i32, i32) {
    %c0_i32 = arith.constant 0 : i32
    %c0_i32_0 = arith.constant 0 : i32
    %c0_i32_1 = arith.constant 0 : i32
    return %c0_i32, %c0_i32_0 : i32, i32
  }
  func.func @transform_5(%arg0: i32) -> (i32, i32) {
    %c0_i32 = arith.constant 0 : i32
    %c0_i32_0 = arith.constant 0 : i32
    return %arg0, %c0_i32 : i32, i32
  }
}

</mosaic_0001>

<llo_original>
// kernel: tpu_custom_call.1
$region0: #{tpu_custom_call.1}
  #allocation0 [shape = 'u32[]', space=smem, size = 0x4, offset = 0x4, fixed_abs, tag = 'smem constant byte address 0x4 - core index']
  #allocation1 [shape = 'u32[72,128]{1,0:T(1,128)}', space=vmem, size = 0x9000, scoped, tag = 'internal scratch']
  %s0 = inlined_call_operand.hbm [shape: f32[8,512], index: 0, kind: input, shape index: {}]
  %s1 = inlined_call_operand.hbm [shape: f32[512,1024], index: 1, kind: input, shape index: {}]
  %s2 = inlined_call_operand.hbm [shape: f32[1,1024], index: 2, kind: input, shape index: {}]
  %s3 = inlined_call_operand.hbm [shape: f32[1024,512], index: 3, kind: input, shape index: {}]
  %s4 = inlined_call_operand.hbm [shape: f32[1,512], index: 4, kind: input, shape index: {}]
  %s5 = inlined_call_operand.hbm [shape: f32[8,512], index: 5, kind: output, shape index: {}]
  %s6 = sld [smem:[#allocation0]]
  $region50: #{tpu_custom_call.1} parent=0
    _
  %s8 = ssub.s32 1, %s6
  %s9 = scalar_select 0, %s8, %s6
  $region1: #{tpu_custom_call.1} parent=0
    #allocation2 [shape = 'u8[16384]{0}', space=vmem, size = 0x4000, scoped, tag = 'input window, operand 0, single buffered']
    #allocation3 [shape = 's32[1]{0}', space=sflag, size = 0x4, scoped, tag = 'scoped memory for tpu_custom_call.1']
    #allocation4 [shape = 's32[1]{0}', space=sflag, size = 0x4, scoped, tag = 'scoped memory for tpu_custom_call.1']
    #allocation5 [shape = 'u8[2097152]{0}', space=vmem, size = 0x200000, scoped, tag = 'input window, operand 1, single buffered']
    #allocation6 [shape = 's32[1]{0}', space=sflag, size = 0x4, scoped, tag = 'scoped memory for tpu_custom_call.1']
    #allocation7 [shape = 'u8[4096]{0}', space=vmem, size = 0x1000, scoped, tag = 'input window, operand 2, single buffered']
    #allocation8 [shape = 'u8[2097152]{0}', space=vmem, size = 0x200000, scoped, tag = 'input window, operand 3, single buffered']
    #allocation9 [shape = 's32[1]{0}', space=sflag, size = 0x4, scoped, tag = 'scoped memory for tpu_custom_call.1']
    #allocation10 [shape = 'u8[2048]{0}', space=vmem, size = 0x800, scoped, tag = 'input window, operand 4, single buffered']
    #allocation11 [shape = 'u8[16384]{0}', space=vmem, size = 0x4000, scoped, tag = 'output window, operand 0, single buffered']
    %10 = vsyncpa [#allocation3], 0
    %11 = vsyncpa [#allocation6], 0
    %12 = vsyncpa [#allocation9], 0
    %13 = vsyncpa [#allocation4], 0
    // Predicated region
    $region2: #{tpu_custom_call.1} parent=1 // pred_check
      _
    $region3: #{tpu_custom_call.1} parent=1 // pred_check_branch
      %15 = sbr.rel (0) target = $region5
    $region4: #{tpu_custom_call.1} parent=1 // pred_region
      %17 = vsyncadd [#allocation3], 0
      %s19 = sshll.u32 %s0, 4
      %s20 = int_to_ptr.hbm [resolvable:$true] %s19
      %s21 = sshll.u32 [#allocation2], 4
      %s22 = int_to_ptr.vmem [resolvable:$true] %s21
      %24 = dma.hbm_to_vmem [thread:$0]  %s20, 512, %s22, [#allocation3]
    $region5: #{tpu_custom_call.1} parent=1 // pred_fallthru
      _
    // Predicated region
    $region6: #{tpu_custom_call.1} parent=1 // pred_check
      _
    $region7: #{tpu_custom_call.1} parent=1 // pred_check_branch
      %26 = sbr.rel (0) target = $region9
    $region8: #{tpu_custom_call.1} parent=1 // pred_region
      %28 = vsyncadd [#allocation6], 0
      %s29 = sshll.u32 %s1, 4
      %s30 = int_to_ptr.hbm [resolvable:$true] %s29
      %s31 = sshll.u32 [#allocation5], 4
      %s32 = int_to_ptr.vmem [resolvable:$true] %s31
      %37 = dma.hbm_to_vmem [thread:$0]  %s30, 65536, %s32, [#allocation6], 1024, 1024, 64
    $region9: #{tpu_custom_call.1} parent=1 // pred_fallthru
      _
    // Predicated region
    $region10: #{tpu_custom_call.1} parent=1 // pred_check
      _
    $region11: #{tpu_custom_call.1} parent=1 // pred_check_branch
      %39 = sbr.rel (0) target = $region13
    $region12: #{tpu_custom_call.1} parent=1 // pred_region
      %41 = vsyncadd [#allocation6], 0
      %s43 = sshll.u32 %s2, 4
      %s44 = int_to_ptr.hbm [resolvable:$true] %s43
      %s45 = sshll.u32 [#allocation7], 4
      %s46 = int_to_ptr.vmem [resolvable:$true] %s45
      %48 = dma.hbm_to_vmem [thread:$0]  %s44, 128, %s46, [#allocation6]
    $region13: #{tpu_custom_call.1} parent=1 // pred_fallthru
      _
    // Predicated region
    $region14: #{tpu_custom_call.1} parent=1 // pred_check
      _
    $region15: #{tpu_custom_call.1} parent=1 // pred_check_branch
      %50 = sbr.rel (0) target = $region17
    $region16: #{tpu_custom_call.1} parent=1 // pred_region
      %52 = vsyncadd [#allocation9], 0
      %s53 = sshll.u32 %s3, 4
      %s54 = int_to_ptr.hbm [resolvable:$true] %s53
      %s55 = sshll.u32 [#allocation8], 4
      %s56 = int_to_ptr.vmem [resolvable:$true] %s55
      %61 = dma.hbm_to_vmem [thread:$0]  %s54, 65536, %s56, [#allocation9], 512, 512, 32
    $region17: #{tpu_custom_call.1} parent=1 // pred_fallthru
      _
    // Predicated region
    $region18: #{tpu_custom_call.1} parent=1 // pred_check
      _
    $region19: #{tpu_custom_call.1} parent=1 // pred_check_branch
      %63 = sbr.rel (0) target = $region21
    $region20: #{tpu_custom_call.1} parent=1 // pred_region
      %65 = vsyncadd [#allocation9], 0
      %s67 = sshll.u32 %s4, 4
      %s68 = int_to_ptr.hbm [resolvable:$true] %s67
      %s69 = sshll.u32 [#allocation10], 4
      %s70 = int_to_ptr.vmem [resolvable:$true] %s69
      %72 = dma.hbm_to_vmem [thread:$0]  %s68, 64, %s70, [#allocation9]
    $region21: #{tpu_custom_call.1} parent=1 // pred_fallthru
      _
    // Predicated region
    $region22: #{tpu_custom_call.1} parent=1 // pred_check
      _
    $region23: #{tpu_custom_call.1} parent=1 // pred_check_branch
      %74 = sbr.rel (0) target = $region25
    $region24: #{tpu_custom_call.1} parent=1 // pred_region
      %76 = dma.done [#allocation3], 512
    $region25: #{tpu_custom_call.1} parent=1 // pred_fallthru
      _
    // Predicated region
    $region26: #{tpu_custom_call.1} parent=1 // pred_check
      _
    $region27: #{tpu_custom_call.1} parent=1 // pred_check_branch
      %78 = sbr.rel (0) target = $region29
    $region28: #{tpu_custom_call.1} parent=1 // pred_region
      %80 = dma.done [#allocation6], 65536
    $region29: #{tpu_custom_call.1} parent=1 // pred_fallthru
      _
    // Predicated region
    $region30: #{tpu_custom_call.1} parent=1 // pred_check
      _
    $region31: #{tpu_custom_call.1} parent=1 // pred_check_branch
      %82 = sbr.rel (0) target = $region33
    $region32: #{tpu_custom_call.1} parent=1 // pred_region
      %84 = dma.done [#allocation6], 128
    $region33: #{tpu_custom_call.1} parent=1 // pred_fallthru
      _
    // Predicated region
    $region34: #{tpu_custom_call.1} parent=1 // pred_check
      _
    $region35: #{tpu_custom_call.1} parent=1 // pred_check_branch
      %86 = sbr.rel (0) target = $region37
    $region36: #{tpu_custom_call.1} parent=1 // pred_region
      %88 = dma.done [#allocation9], 65536
    $region37: #{tpu_custom_call.1} parent=1 // pred_fallthru
      _
    // Predicated region
    $region38: #{tpu_custom_call.1} parent=1 // pred_check
      _
    $region39: #{tpu_custom_call.1} parent=1 // pred_check_branch
      %90 = sbr.rel (0) target = $region41
    $region40: #{tpu_custom_call.1} parent=1 // pred_region
      %92 = dma.done [#allocation9], 64
    $region41: #{tpu_custom_call.1} parent=1 // pred_fallthru
      _
    %v93 = vld [vmem:[#allocation2] sm:$0xff]
    %v94 = vld [vmem:[#allocation2 + $0x8] sm:$0xff]
    %v95 = vld [vmem:[#allocation2 + $0x10] sm:$0xff]
    %v96 = vld [vmem:[#allocation2 + $0x18] sm:$0xff]
    %v97 = vld [vmem:[#allocation5] sm:$0xff]
    %v98 = vld [vmem:[#allocation5 + $0x8] sm:$0xff]
    %v99 = vld [vmem:[#allocation5 + $0x10] sm:$0xff]
    %v100 = vld [vmem:[#allocation5 + $0x18] sm:$0xff]
    %v101 = vld [vmem:[#allocation5 + $0x20] sm:$0xff]
    %v102 = vld [vmem:[#allocation5 + $0x28] sm:$0xff]
    %v103 = vld [vmem:[#allocation5 + $0x30] sm:$0xff]
    %v104 = vld [vmem:[#allocation5 + $0x38] sm:$0xff]
    %v105 = vld [vmem:[#allocation5 + $0x40] sm:$0xff]
    %v106 = vld [vmem:[#allocation5 + $0x48] sm:$0xff]
    %v107 = vld [vmem:[#allocation5 + $0x50] sm:$0xff]
    %v108 = vld [vmem:[#allocation5 + $0x58] sm:$0xff]
    %v109 = vld [vmem:[#allocation5 + $0x60] sm:$0xff]
    %v110 = vld [vmem:[#allocation5 + $0x68] sm:$0xff]
    %v111 = vld [vmem:[#allocation5 + $0x70] sm:$0xff]
    %v112 = vld [vmem:[#allocation5 + $0x78] sm:$0xff]
    %v113 = vld [vmem:[#allocation5 + $0x80] sm:$0xff]
    %v114 = vld [vmem:[#allocation5 + $0x88] sm:$0xff]
    %v115 = vld [vmem:[#allocation5 + $0x90] sm:$0xff]
    %v116 = vld [vmem:[#allocation5 + $0x98] sm:$0xff]
    %v117 = vld [vmem:[#allocation5 + $0xa0] sm:$0xff]
    %v118 = vld [vmem:[#allocation5 + $0xa8] sm:$0xff]
    %v119 = vld [vmem:[#allocation5 + $0xb0] sm:$0xff]
    %v120 = vld [vmem:[#allocation5 + $0xb8] sm:$0xff]
    %v121 = vld [vmem:[#allocation5 + $0xc0] sm:$0xff]
    %v122 = vld [vmem:[#allocation5 + $0xc8] sm:$0xff]
    %v123 = vld [vmem:[#allocation5 + $0xd0] sm:$0xff]
    %v124 = vld [vmem:[#allocation5 + $0xd8] sm:$0xff]
    %v125 = vld [vmem:[#allocation5 + $0xe0] sm:$0xff]
    %v126 = vld [vmem:[#allocation5 + $0xe8] sm:$0xff]
    %v127 = vld [vmem:[#allocation5 + $0xf0] sm:$0xff]
    %v128 = vld [vmem:[#allocation5 + $0xf8] sm:$0xff]
    %v129 = vld [vmem:[#allocation5 + $0x100] sm:$0xff]
    %v130 = vld [vmem:[#allocation5 + $0x108] sm:$0xff]
    %v131 = vld [vmem:[#allocation5 + $0x110] sm:$0xff]
    %v132 = vld [vmem:[#allocation5 + $0x118] sm:$0xff]
    %v133 = vld [vmem:[#allocation5 + $0x120] sm:$0xff]
    %v134 = vld [vmem:[#allocation5 + $0x128] sm:$0xff]
    %v135 = vld [vmem:[#allocation5 + $0x130] sm:$0xff]
    %v136 = vld [vmem:[#allocation5 + $0x138] sm:$0xff]
    %v137 = vld [vmem:[#allocation5 + $0x140] sm:$0xff]
    %v138 = vld [vmem:[#allocation5 + $0x148] sm:$0xff]
    %v139 = vld [vmem:[#allocation5 + $0x150] sm:$0xff]
    %v140 = vld [vmem:[#allocation5 + $0x158] sm:$0xff]
    %v141 = vld [vmem:[#allocation5 + $0x160] sm:$0xff]
    %v142 = vld [vmem:[#allocation5 + $0x168] sm:$0xff]
    %v143 = vld [vmem:[#allocation5 + $0x170] sm:$0xff]
    %v144 = vld [vmem:[#allocation5 + $0x178] sm:$0xff]
    %v145 = vld [vmem:[#allocation5 + $0x180] sm:$0xff]
    %v146 = vld [vmem:[#allocation5 + $0x188] sm:$0xff]
    %v147 = vld [vmem:[#allocation5 + $0x190] sm:$0xff]
    %v148 = vld [vmem:[#allocation5 + $0x198] sm:$0xff]
    %v149 = vld [vmem:[#allocation5 + $0x1a0] sm:$0xff]
    %v150 = vld [vmem:[#allocation5 + $0x1a8] sm:$0xff]
    %v151 = vld [vmem:[#allocation5 + $0x1b0] sm:$0xff]
    %v152 = vld [vmem:[#allocation5 + $0x1b8] sm:$0xff]
    %v153 = vld [vmem:[#allocation5 + $0x1c0] sm:$0xff]
    %v154 = vld [vmem:[#allocation5 + $0x1c8] sm:$0xff]
    %v155 = vld [vmem:[#allocation5 + $0x1d0] sm:$0xff]
    %v156 = vld [vmem:[#allocation5 + $0x1d8] sm:$0xff]
    %v157 = vld [vmem:[#allocation5 + $0x1e0] sm:$0xff]
    %v158 = vld [vmem:[#allocation5 + $0x1e8] sm:$0xff]
    %v159 = vld [vmem:[#allocation5 + $0x1f0] sm:$0xff]
    %v160 = vld [vmem:[#allocation5 + $0x1f8] sm:$0xff]
    %v161 = vld [vmem:[#allocation5 + $0x200] sm:$0xff]
    %v162 = vld [vmem:[#allocation5 + $0x208] sm:$0xff]
    %v163 = vld [vmem:[#allocation5 + $0x210] sm:$0xff]
    %v164 = vld [vmem:[#allocation5 + $0x218] sm:$0xff]
    %v165 = vld [vmem:[#allocation5 + $0x220] sm:$0xff]
    %v166 = vld [vmem:[#allocation5 + $0x228] sm:$0xff]
    %v167 = vld [vmem:[#allocation5 + $0x230] sm:$0xff]
    %v168 = vld [vmem:[#allocation5 + $0x238] sm:$0xff]
    %v169 = vld [vmem:[#allocation5 + $0x240] sm:$0xff]
    %v170 = vld [vmem:[#allocation5 + $0x248] sm:$0xff]
    %v171 = vld [vmem:[#allocation5 + $0x250] sm:$0xff]
    %v172 = vld [vmem:[#allocation5 + $0x258] sm:$0xff]
    %v173 = vld [vmem:[#allocation5 + $0x260] sm:$0xff]
    %v174 = vld [vmem:[#allocation5 + $0x268] sm:$0xff]
    %v175 = vld [vmem:[#allocation5 + $0x270] sm:$0xff]
    %v176 = vld [vmem:[#allocation5 + $0x278] sm:$0xff]
    %v177 = vld [vmem:[#allocation5 + $0x280] sm:$0xff]
    %v178 = vld [vmem:[#allocation5 + $0x288] sm:$0xff]
    %v179 = vld [vmem:[#allocation5 + $0x290] sm:$0xff]
    %v180 = vld [vmem:[#allocation5 + $0x298] sm:$0xff]
    %v181 = vld [vmem:[#allocation5 + $0x2a0] sm:$0xff]
    %v182 = vld [vmem:[#allocation5 + $0x2a8] sm:$0xff]
    %v183 = vld [vmem:[#allocation5 + $0x2b0] sm:$0xff]
    %v184 = vld [vmem:[#allocation5 + $0x2b8] sm:$0xff]
    %v185 = vld [vmem:[#allocation5 + $0x2c0] sm:$0xff]
    %v186 = vld [vmem:[#allocation5 + $0x2c8] sm:$0xff]
    %v187 = vld [vmem:[#allocation5 + $0x2d0] sm:$0xff]
    %v188 = vld [vmem:[#allocation5 + $0x2d8] sm:$0xff]
    %v189 = vld [vmem:[#allocation5 + $0x2e0] sm:$0xff]
    %v190 = vld [vmem:[#allocation5 + $0x2e8] sm:$0xff]
    %v191 = vld [vmem:[#allocation5 + $0x2f0] sm:$0xff]
    %v192 = vld [vmem:[#allocation5 + $0x2f8] sm:$0xff]
    %v193 = vld [vmem:[#allocation5 + $0x300] sm:$0xff]
    %v194 = vld [vmem:[#allocation5 + $0x308] sm:$0xff]
    %v195 = vld [vmem:[#allocation5 + $0x310] sm:$0xff]
    %v196 = vld [vmem:[#allocation5 + $0x318] sm:$0xff]
    %v197 = vld [vmem:[#allocation5 + $0x320] sm:$0xff]
    %v198 = vld [vmem:[#allocation5 + $0x328] sm:$0xff]
    %v199 = vld [vmem:[#allocation5 + $0x330] sm:$0xff]
    %v200 = vld [vmem:[#allocation5 + $0x338] sm:$0xff]
    %v201 = vld [vmem:[#allocation5 + $0x340] sm:$0xff]
    %v202 = vld [vmem:[#allocation5 + $0x348] sm:$0xff]
    %v203 = vld [vmem:[#allocation5 + $0x350] sm:$0xff]
    %v204 = vld [vmem:[#allocation5 + $0x358] sm:$0xff]
    %v205 = vld [vmem:[#allocation5 + $0x360] sm:$0xff]
    %v206 = vld [vmem:[#allocation5 + $0x368] sm:$0xff]
    %v207 = vld [vmem:[#allocation5 + $0x370] sm:$0xff]
    %v208 = vld [vmem:[#allocation5 + $0x378] sm:$0xff]
    %v209 = vld [vmem:[#allocation5 + $0x380] sm:$0xff]
    %v210 = vld [vmem:[#allocation5 + $0x388] sm:$0xff]
    %v211 = vld [vmem:[#allocation5 + $0x390] sm:$0xff]
    %v212 = vld [vmem:[#allocation5 + $0x398] sm:$0xff]
    %v213 = vld [vmem:[#allocation5 + $0x3a0] sm:$0xff]
    %v214 = vld [vmem:[#allocation5 + $0x3a8] sm:$0xff]
    %v215 = vld [vmem:[#allocation5 + $0x3b0] sm:$0xff]
    %v216 = vld [vmem:[#allocation5 + $0x3b8] sm:$0xff]
    %v217 = vld [vmem:[#allocation5 + $0x3c0] sm:$0xff]
    %v218 = vld [vmem:[#allocation5 + $0x3c8] sm:$0xff]
    %v219 = vld [vmem:[#allocation5 + $0x3d0] sm:$0xff]
    %v220 = vld [vmem:[#allocation5 + $0x3d8] sm:$0xff]
    %v221 = vld [vmem:[#allocation5 + $0x3e0] sm:$0xff]
    %v222 = vld [vmem:[#allocation5 + $0x3e8] sm:$0xff]
    %v223 = vld [vmem:[#allocation5 + $0x3f0] sm:$0xff]
    %v224 = vld [vmem:[#allocation5 + $0x3f8] sm:$0xff]
    %v225 = vld [vmem:[#allocation5 + $0x400] sm:$0xff]
    %v226 = vld [vmem:[#allocation5 + $0x408] sm:$0xff]
    %v227 = vld [vmem:[#allocation5 + $0x410] sm:$0xff]
    %v228 = vld [vmem:[#allocation5 + $0x418] sm:$0xff]
    %v229 = vld [vmem:[#allocation5 + $0x420] sm:$0xff]
    %v230 = vld [vmem:[#allocation5 + $0x428] sm:$0xff]
    %v231 = vld [vmem:[#allocation5 + $0x430] sm:$0xff]
    %v232 = vld [vmem:[#allocation5 + $0x438] sm:$0xff]
    %v233 = vld [vmem:[#allocation5 + $0x440] sm:$0xff]
    %v234 = vld [vmem:[#allocation5 + $0x448] sm:$0xff]
    %v235 = vld [vmem:[#allocation5 + $0x450] sm:$0xff]
    %v236 = vld [vmem:[#allocation5 + $0x458] sm:$0xff]
    %v237 = vld [vmem:[#allocation5 + $0x460] sm:$0xff]
    %v238 = vld [vmem:[#allocation5 + $0x468] sm:$0xff]
    %v239 = vld [vmem:[#allocation5 + $0x470] sm:$0xff]
    %v240 = vld [vmem:[#allocation5 + $0x478] sm:$0xff]
    %v241 = vld [vmem:[#allocation5 + $0x480] sm:$0xff]
    %v242 = vld [vmem:[#allocation5 + $0x488] sm:$0xff]
    %v243 = vld [vmem:[#allocation5 + $0x490] sm:$0xff]
    %v244 = vld [vmem:[#allocation5 + $0x498] sm:$0xff]
    %v245 = vld [vmem:[#allocation5 + $0x4a0] sm:$0xff]
    %v246 = vld [vmem:[#allocation5 + $0x4a8] sm:$0xff]
    %v247 = vld [vmem:[#allocation5 + $0x4b0] sm:$0xff]
    %v248 = vld [vmem:[#allocation5 + $0x4b8] sm:$0xff]
    %v249 = vld [vmem:[#allocation5 + $0x4c0] sm:$0xff]
    %v250 = vld [vmem:[#allocation5 + $0x4c8] sm:$0xff]
    %v251 = vld [vmem:[#allocation5 + $0x4d0] sm:$0xff]
    %v252 = vld [vmem:[#allocation5 + $0x4d8] sm:$0xff]
    %v253 = vld [vmem:[#allocation5 + $0x4e0] sm:$0xff]
    %v254 = vld [vmem:[#allocation5 + $0x4e8] sm:$0xff]
    %v255 = vld [vmem:[#allocation5 + $0x4f0] sm:$0xff]
    %v256 = vld [vmem:[#allocation5 + $0x4f8] sm:$0xff]
    %v257 = vld [vmem:[#allocation5 + $0x500] sm:$0xff]
    %v258 = vld [vmem:[#allocation5 + $0x508] sm:$0xff]
    %v259 = vld [vmem:[#allocation5 + $0x510] sm:$0xff]
    %v260 = vld [vmem:[#allocation5 + $0x518] sm:$0xff]
    %v261 = vld [vmem:[#allocation5 + $0x520] sm:$0xff]
    %v262 = vld [vmem:[#allocation5 + $0x528] sm:$0xff]
    %v263 = vld [vmem:[#allocation5 + $0x530] sm:$0xff]
    %v264 = vld [vmem:[#allocation5 + $0x538] sm:$0xff]
    %v265 = vld [vmem:[#allocation5 + $0x540] sm:$0xff]
    %v266 = vld [vmem:[#allocation5 + $0x548] sm:$0xff]
    %v267 = vld [vmem:[#allocation5 + $0x550] sm:$0xff]
    %v268 = vld [vmem:[#allocation5 + $0x558] sm:$0xff]
    %v269 = vld [vmem:[#allocation5 + $0x560] sm:$0xff]
    %v270 = vld [vmem:[#allocation5 + $0x568] sm:$0xff]
    %v271 = vld [vmem:[#allocation5 + $0x570] sm:$0xff]
    %v272 = vld [vmem:[#allocation5 + $0x578] sm:$0xff]
    %v273 = vld [vmem:[#allocation5 + $0x580] sm:$0xff]
    %v274 = vld [vmem:[#allocation5 + $0x588] sm:$0xff]
    %v275 = vld [vmem:[#allocation5 + $0x590] sm:$0xff]
    %v276 = vld [vmem:[#allocation5 + $0x598] sm:$0xff]
    %v277 = vld [vmem:[#allocation5 + $0x5a0] sm:$0xff]
    %v278 = vld [vmem:[#allocation5 + $0x5a8] sm:$0xff]
    %v279 = vld [vmem:[#allocation5 + $0x5b0] sm:$0xff]
    %v280 = vld [vmem:[#allocation5 + $0x5b8] sm:$0xff]
    %v281 = vld [vmem:[#allocation5 + $0x5c0] sm:$0xff]
    %v282 = vld [vmem:[#allocation5 + $0x5c8] sm:$0xff]
    %v283 = vld [vmem:[#allocation5 + $0x5d0] sm:$0xff]
    %v284 = vld [vmem:[#allocation5 + $0x5d8] sm:$0xff]
    %v285 = vld [vmem:[#allocation5 + $0x5e0] sm:$0xff]
    %v286 = vld [vmem:[#allocation5 + $0x5e8] sm:$0xff]
    %v287 = vld [vmem:[#allocation5 + $0x5f0] sm:$0xff]
    %v288 = vld [vmem:[#allocation5 + $0x5f8] sm:$0xff]
    %v289 = vld [vmem:[#allocation5 + $0x600] sm:$0xff]
    %v290 = vld [vmem:[#allocation5 + $0x608] sm:$0xff]
    %v291 = vld [vmem:[#allocation5 + $0x610] sm:$0xff]
    %v292 = vld [vmem:[#allocation5 + $0x618] sm:$0xff]
    %v293 = vld [vmem:[#allocation5 + $0x620] sm:$0xff]
    %v294 = vld [vmem:[#allocation5 + $0x628] sm:$0xff]
    %v295 = vld [vmem:[#allocation5 + $0x630] sm:$0xff]
    %v296 = vld [vmem:[#allocation5 + $0x638] sm:$0xff]
    %v297 = vld [vmem:[#allocation5 + $0x640] sm:$0xff]
    %v298 = vld [vmem:[#allocation5 + $0x648] sm:$0xff]
    %v299 = vld [vmem:[#allocation5 + $0x650] sm:$0xff]
    %v300 = vld [vmem:[#allocation5 + $0x658] sm:$0xff]
    %v301 = vld [vmem:[#allocation5 + $0x660] sm:$0xff]
    %v302 = vld [vmem:[#allocation5 + $0x668] sm:$0xff]
    %v303 = vld [vmem:[#allocation5 + $0x670] sm:$0xff]
    %v304 = vld [vmem:[#allocation5 + $0x678] sm:$0xff]
    %v305 = vld [vmem:[#allocation5 + $0x680] sm:$0xff]
    %v306 = vld [vmem:[#allocation5 + $0x688] sm:$0xff]
    %v307 = vld [vmem:[#allocation5 + $0x690] sm:$0xff]
    %v308 = vld [vmem:[#allocation5 + $0x698] sm:$0xff]
    %v309 = vld [vmem:[#allocation5 + $0x6a0] sm:$0xff]
    %v310 = vld [vmem:[#allocation5 + $0x6a8] sm:$0xff]
    %v311 = vld [vmem:[#allocation5 + $0x6b0] sm:$0xff]
    %v312 = vld [vmem:[#allocation5 + $0x6b8] sm:$0xff]
    %v313 = vld [vmem:[#allocation5 + $0x6c0] sm:$0xff]
    %v314 = vld [vmem:[#allocation5 + $0x6c8] sm:$0xff]
    %v315 = vld [vmem:[#allocation5 + $0x6d0] sm:$0xff]
    %v316 = vld [vmem:[#allocation5 + $0x6d8] sm:$0xff]
    %v317 = vld [vmem:[#allocation5 + $0x6e0] sm:$0xff]
    %v318 = vld [vmem:[#allocation5 + $0x6e8] sm:$0xff]
    %v319 = vld [vmem:[#allocation5 + $0x6f0] sm:$0xff]
    %v320 = vld [vmem:[#allocation5 + $0x6f8] sm:$0xff]
    %v321 = vld [vmem:[#allocation5 + $0x700] sm:$0xff]
    %v322 = vld [vmem:[#allocation5 + $0x708] sm:$0xff]
    %v323 = vld [vmem:[#allocation5 + $0x710] sm:$0xff]
    %v324 = vld [vmem:[#allocation5 + $0x718] sm:$0xff]
    %v325 = vld [vmem:[#allocation5 + $0x720] sm:$0xff]
    %v326 = vld [vmem:[#allocation5 + $0x728] sm:$0xff]
    %v327 = vld [vmem:[#allocation5 + $0x730] sm:$0xff]
    %v328 = vld [vmem:[#allocation5 + $0x738] sm:$0xff]
    %v329 = vld [vmem:[#allocation5 + $0x740] sm:$0xff]
    %v330 = vld [vmem:[#allocation5 + $0x748] sm:$0xff]
    %v331 = vld [vmem:[#allocation5 + $0x750] sm:$0xff]
    %v332 = vld [vmem:[#allocation5 + $0x758] sm:$0xff]
    %v333 = vld [vmem:[#allocation5 + $0x760] sm:$0xff]
    %v334 = vld [vmem:[#allocation5 + $0x768] sm:$0xff]
    %v335 = vld [vmem:[#allocation5 + $0x770] sm:$0xff]
    %v336 = vld [vmem:[#allocation5 + $0x778] sm:$0xff]
    %v337 = vld [vmem:[#allocation5 + $0x780] sm:$0xff]
    %v338 = vld [vmem:[#allocation5 + $0x788] sm:$0xff]
    %v339 = vld [vmem:[#allocation5 + $0x790] sm:$0xff]
    %v340 = vld [vmem:[#allocation5 + $0x798] sm:$0xff]
    %v341 = vld [vmem:[#allocation5 + $0x7a0] sm:$0xff]
    %v342 = vld [vmem:[#allocation5 + $0x7a8] sm:$0xff]
    %v343 = vld [vmem:[#allocation5 + $0x7b0] sm:$0xff]
    %v344 = vld [vmem:[#allocation5 + $0x7b8] sm:$0xff]
    %v345 = vld [vmem:[#allocation5 + $0x7c0] sm:$0xff]
    %v346 = vld [vmem:[#allocation5 + $0x7c8] sm:$0xff]
    %v347 = vld [vmem:[#allocation5 + $0x7d0] sm:$0xff]
    %v348 = vld [vmem:[#allocation5 + $0x7d8] sm:$0xff]
    %v349 = vld [vmem:[#allocation5 + $0x7e0] sm:$0xff]
    %v350 = vld [vmem:[#allocation5 + $0x7e8] sm:$0xff]
    %v351 = vld [vmem:[#allocation5 + $0x7f0] sm:$0xff]
    %v352 = vld [vmem:[#allocation5 + $0x7f8] sm:$0xff]
    %v353 = vld [vmem:[#allocation5 + $0x800] sm:$0xff]
    %v354 = vld [vmem:[#allocation5 + $0x808] sm:$0xff]
    %v355 = vld [vmem:[#allocation5 + $0x810] sm:$0xff]
    %v356 = vld [vmem:[#allocation5 + $0x818] sm:$0xff]
    %v357 = vld [vmem:[#allocation5 + $0x820] sm:$0xff]
    %v358 = vld [vmem:[#allocation5 + $0x828] sm:$0xff]
    %v359 = vld [vmem:[#allocation5 + $0x830] sm:$0xff]
    %v360 = vld [vmem:[#allocation5 + $0x838] sm:$0xff]
    %v361 = vld [vmem:[#allocation5 + $0x840] sm:$0xff]
    %v362 = vld [vmem:[#allocation5 + $0x848] sm:$0xff]
    %v363 = vld [vmem:[#allocation5 + $0x850] sm:$0xff]
    %v364 = vld [vmem:[#allocation5 + $0x858] sm:$0xff]
    %v365 = vld [vmem:[#allocation5 + $0x860] sm:$0xff]
    %v366 = vld [vmem:[#allocation5 + $0x868] sm:$0xff]
    %v367 = vld [vmem:[#allocation5 + $0x870] sm:$0xff]
    %v368 = vld [vmem:[#allocation5 + $0x878] sm:$0xff]
    %v369 = vld [vmem:[#allocation5 + $0x880] sm:$0xff]
    %v370 = vld [vmem:[#allocation5 + $0x888] sm:$0xff]
    %v371 = vld [vmem:[#allocation5 + $0x890] sm:$0xff]
    %v372 = vld [vmem:[#allocation5 + $0x898] sm:$0xff]
    %v373 = vld [vmem:[#allocation5 + $0x8a0] sm:$0xff]
    %v374 = vld [vmem:[#allocation5 + $0x8a8] sm:$0xff]
    %v375 = vld [vmem:[#allocation5 + $0x8b0] sm:$0xff]
    %v376 = vld [vmem:[#allocation5 + $0x8b8] sm:$0xff]
    %v377 = vld [vmem:[#allocation5 + $0x8c0] sm:$0xff]
    %v378 = vld [vmem:[#allocation5 + $0x8c8] sm:$0xff]
    %v379 = vld [vmem:[#allocation5 + $0x8d0] sm:$0xff]
    %v380 = vld [vmem:[#allocation5 + $0x8d8] sm:$0xff]
    %v381 = vld [vmem:[#allocation5 + $0x8e0] sm:$0xff]
    %v382 = vld [vmem:[#allocation5 + $0x8e8] sm:$0xff]
    %v383 = vld [vmem:[#allocation5 + $0x8f0] sm:$0xff]
    %v384 = vld [vmem:[#allocation5 + $0x8f8] sm:$0xff]
    %v385 = vld [vmem:[#allocation5 + $0x900] sm:$0xff]
    %v386 = vld [vmem:[#allocation5 + $0x908] sm:$0xff]
    %v387 = vld [vmem:[#allocation5 + $0x910] sm:$0xff]
    %v388 = vld [vmem:[#allocation5 + $0x918] sm:$0xff]
    %v389 = vld [vmem:[#allocation5 + $0x920] sm:$0xff]
    %v390 = vld [vmem:[#allocation5 + $0x928] sm:$0xff]
    %v391 = vld [vmem:[#allocation5 + $0x930] sm:$0xff]
    %v392 = vld [vmem:[#allocation5 + $0x938] sm:$0xff]
    %v393 = vld [vmem:[#allocation5 + $0x940] sm:$0xff]
    %v394 = vld [vmem:[#allocation5 + $0x948] sm:$0xff]
    %v395 = vld [vmem:[#allocation5 + $0x950] sm:$0xff]
    %v396 = vld [vmem:[#allocation5 + $0x958] sm:$0xff]
    %v397 = vld [vmem:[#allocation5 + $0x960] sm:$0xff]
    %v398 = vld [vmem:[#allocation5 + $0x968] sm:$0xff]
    %v399 = vld [vmem:[#allocation5 + $0x970] sm:$0xff]
    %v400 = vld [vmem:[#allocation5 + $0x978] sm:$0xff]
    %v401 = vld [vmem:[#allocation5 + $0x980] sm:$0xff]
    %v402 = vld [vmem:[#allocation5 + $0x988] sm:$0xff]
    %v403 = vld [vmem:[#allocation5 + $0x990] sm:$0xff]
    %v404 = vld [vmem:[#allocation5 + $0x998] sm:$0xff]
    %v405 = vld [vmem:[#allocation5 + $0x9a0] sm:$0xff]
    %v406 = vld [vmem:[#allocation5 + $0x9a8] sm:$0xff]
    %v407 = vld [vmem:[#allocation5 + $0x9b0] sm:$0xff]
    %v408 = vld [vmem:[#allocation5 + $0x9b8] sm:$0xff]
    %v409 = vld [vmem:[#allocation5 + $0x9c0] sm:$0xff]
    %v410 = vld [vmem:[#allocation5 + $0x9c8] sm:$0xff]
    %v411 = vld [vmem:[#allocation5 + $0x9d0] sm:$0xff]
    %v412 = vld [vmem:[#allocation5 + $0x9d8] sm:$0xff]
    %v413 = vld [vmem:[#allocation5 + $0x9e0] sm:$0xff]
    %v414 = vld [vmem:[#allocation5 + $0x9e8] sm:$0xff]
    %v415 = vld [vmem:[#allocation5 + $0x9f0] sm:$0xff]
    %v416 = vld [vmem:[#allocation5 + $0x9f8] sm:$0xff]
    %v417 = vld [vmem:[#allocation5 + $0xa00] sm:$0xff]
    %v418 = vld [vmem:[#allocation5 + $0xa08] sm:$0xff]
    %v419 = vld [vmem:[#allocation5 + $0xa10] sm:$0xff]
    %v420 = vld [vmem:[#allocation5 + $0xa18] sm:$0xff]
    %v421 = vld [vmem:[#allocation5 + $0xa20] sm:$0xff]
    %v422 = vld [vmem:[#allocation5 + $0xa28] sm:$0xff]
    %v423 = vld [vmem:[#allocation5 + $0xa30] sm:$0xff]
    %v424 = vld [vmem:[#allocation5 + $0xa38] sm:$0xff]
    %v425 = vld [vmem:[#allocation5 + $0xa40] sm:$0xff]
    %v426 = vld [vmem:[#allocation5 + $0xa48] sm:$0xff]
    %v427 = vld [vmem:[#allocation5 + $0xa50] sm:$0xff]
    %v428 = vld [vmem:[#allocation5 + $0xa58] sm:$0xff]
    %v429 = vld [vmem:[#allocation5 + $0xa60] sm:$0xff]
    %v430 = vld [vmem:[#allocation5 + $0xa68] sm:$0xff]
    %v431 = vld [vmem:[#allocation5 + $0xa70] sm:$0xff]
    %v432 = vld [vmem:[#allocation5 + $0xa78] sm:$0xff]
    %v433 = vld [vmem:[#allocation5 + $0xa80] sm:$0xff]
    %v434 = vld [vmem:[#allocation5 + $0xa88] sm:$0xff]
    %v435 = vld [vmem:[#allocation5 + $0xa90] sm:$0xff]
    %v436 = vld [vmem:[#allocation5 + $0xa98] sm:$0xff]
    %v437 = vld [vmem:[#allocation5 + $0xaa0] sm:$0xff]
    %v438 = vld [vmem:[#allocation5 + $0xaa8] sm:$0xff]
    %v439 = vld [vmem:[#allocation5 + $0xab0] sm:$0xff]
    %v440 = vld [vmem:[#allocation5 + $0xab8] sm:$0xff]
    %v441 = vld [vmem:[#allocation5 + $0xac0] sm:$0xff]
    %v442 = vld [vmem:[#allocation5 + $0xac8] sm:$0xff]
    %v443 = vld [vmem:[#allocation5 + $0xad0] sm:$0xff]
    %v444 = vld [vmem:[#allocation5 + $0xad8] sm:$0xff]
    %v445 = vld [vmem:[#allocation5 + $0xae0] sm:$0xff]
    %v446 = vld [vmem:[#allocation5 + $0xae8] sm:$0xff]
    %v447 = vld [vmem:[#allocation5 + $0xaf0] sm:$0xff]
    %v448 = vld [vmem:[#allocation5 + $0xaf8] sm:$0xff]
    %v449 = vld [vmem:[#allocation5 + $0xb00] sm:$0xff]
    %v450 = vld [vmem:[#allocation5 + $0xb08] sm:$0xff]
    %v451 = vld [vmem:[#allocation5 + $0xb10] sm:$0xff]
    %v452 = vld [vmem:[#allocation5 + $0xb18] sm:$0xff]
    %v453 = vld [vmem:[#allocation5 + $0xb20] sm:$0xff]
    %v454 = vld [vmem:[#allocation5 + $0xb28] sm:$0xff]
    %v455 = vld [vmem:[#allocation5 + $0xb30] sm:$0xff]
    %v456 = vld [vmem:[#allocation5 + $0xb38] sm:$0xff]
    %v457 = vld [vmem:[#allocation5 + $0xb40] sm:$0xff]
    %v458 = vld [vmem:[#allocation5 + $0xb48] sm:$0xff]
    %v459 = vld [vmem:[#allocation5 + $0xb50] sm:$0xff]
    %v460 = vld [vmem:[#allocation5 + $0xb58] sm:$0xff]
    %v461 = vld [vmem:[#allocation5 + $0xb60] sm:$0xff]
    %v462 = vld [vmem:[#allocation5 + $0xb68] sm:$0xff]
    %v463 = vld [vmem:[#allocation5 + $0xb70] sm:$0xff]
    %v464 = vld [vmem:[#allocation5 + $0xb78] sm:$0xff]
    %v465 = vld [vmem:[#allocation5 + $0xb80] sm:$0xff]
    %v466 = vld [vmem:[#allocation5 + $0xb88] sm:$0xff]
    %v467 = vld [vmem:[#allocation5 + $0xb90] sm:$0xff]
    %v468 = vld [vmem:[#allocation5 + $0xb98] sm:$0xff]
    %v469 = vld [vmem:[#allocation5 + $0xba0] sm:$0xff]
    %v470 = vld [vmem:[#allocation5 + $0xba8] sm:$0xff]
    %v471 = vld [vmem:[#allocation5 + $0xbb0] sm:$0xff]
    %v472 = vld [vmem:[#allocation5 + $0xbb8] sm:$0xff]
    %v473 = vld [vmem:[#allocation5 + $0xbc0] sm:$0xff]
    %v474 = vld [vmem:[#allocation5 + $0xbc8] sm:$0xff]
    %v475 = vld [vmem:[#allocation5 + $0xbd0] sm:$0xff]
    %v476 = vld [vmem:[#allocation5 + $0xbd8] sm:$0xff]
    %v477 = vld [vmem:[#allocation5 + $0xbe0] sm:$0xff]
    %v478 = vld [vmem:[#allocation5 + $0xbe8] sm:$0xff]
    %v479 = vld [vmem:[#allocation5 + $0xbf0] sm:$0xff]
    %v480 = vld [vmem:[#allocation5 + $0xbf8] sm:$0xff]
    %v481 = vld [vmem:[#allocation5 + $0xc00] sm:$0xff]
    %v482 = vld [vmem:[#allocation5 + $0xc08] sm:$0xff]
    %v483 = vld [vmem:[#allocation5 + $0xc10] sm:$0xff]
    %v484 = vld [vmem:[#allocation5 + $0xc18] sm:$0xff]
    %v485 = vld [vmem:[#allocation5 + $0xc20] sm:$0xff]
    %v486 = vld [vmem:[#allocation5 + $0xc28] sm:$0xff]
    %v487 = vld [vmem:[#allocation5 + $0xc30] sm:$0xff]
    %v488 = vld [vmem:[#allocation5 + $0xc38] sm:$0xff]
    %v489 = vld [vmem:[#allocation5 + $0xc40] sm:$0xff]
    %v490 = vld [vmem:[#allocation5 + $0xc48] sm:$0xff]
    %v491 = vld [vmem:[#allocation5 + $0xc50] sm:$0xff]
    %v492 = vld [vmem:[#allocation5 + $0xc58] sm:$0xff]
    %v493 = vld [vmem:[#allocation5 + $0xc60] sm:$0xff]
    %v494 = vld [vmem:[#allocation5 + $0xc68] sm:$0xff]
    %v495 = vld [vmem:[#allocation5 + $0xc70] sm:$0xff]
    %v496 = vld [vmem:[#allocation5 + $0xc78] sm:$0xff]
    %v497 = vld [vmem:[#allocation5 + $0xc80] sm:$0xff]
    %v498 = vld [vmem:[#allocation5 + $0xc88] sm:$0xff]
    %v499 = vld [vmem:[#allocation5 + $0xc90] sm:$0xff]
    %v500 = vld [vmem:[#allocation5 + $0xc98] sm:$0xff]
    %v501 = vld [vmem:[#allocation5 + $0xca0] sm:$0xff]
    %v502 = vld [vmem:[#allocation5 + $0xca8] sm:$0xff]
    %v503 = vld [vmem:[#allocation5 + $0xcb0] sm:$0xff]
    %v504 = vld [vmem:[#allocation5 + $0xcb8] sm:$0xff]
    %v505 = vld [vmem:[#allocation5 + $0xcc0] sm:$0xff]
    %v506 = vld [vmem:[#allocation5 + $0xcc8] sm:$0xff]
    %v507 = vld [vmem:[#allocation5 + $0xcd0] sm:$0xff]
    %v508 = vld [vmem:[#allocation5 + $0xcd8] sm:$0xff]
    %v509 = vld [vmem:[#allocation5 + $0xce0] sm:$0xff]
    %v510 = vld [vmem:[#allocation5 + $0xce8] sm:$0xff]
    %v511 = vld [vmem:[#allocation5 + $0xcf0] sm:$0xff]
    %v512 = vld [vmem:[#allocation5 + $0xcf8] sm:$0xff]
    %v513 = vld [vmem:[#allocation5 + $0xd00] sm:$0xff]
    %v514 = vld [vmem:[#allocation5 + $0xd08] sm:$0xff]
    %v515 = vld [vmem:[#allocation5 + $0xd10] sm:$0xff]
    %v516 = vld [vmem:[#allocation5 + $0xd18] sm:$0xff]
    %v517 = vld [vmem:[#allocation5 + $0xd20] sm:$0xff]
    %v518 = vld [vmem:[#allocation5 + $0xd28] sm:$0xff]
    %v519 = vld [vmem:[#allocation5 + $0xd30] sm:$0xff]
    %v520 = vld [vmem:[#allocation5 + $0xd38] sm:$0xff]
    %v521 = vld [vmem:[#allocation5 + $0xd40] sm:$0xff]
    %v522 = vld [vmem:[#allocation5 + $0xd48] sm:$0xff]
    %v523 = vld [vmem:[#allocation5 + $0xd50] sm:$0xff]
    %v524 = vld [vmem:[#allocation5 + $0xd58] sm:$0xff]
    %v525 = vld [vmem:[#allocation5 + $0xd60] sm:$0xff]
    %v526 = vld [vmem:[#allocation5 + $0xd68] sm:$0xff]
    %v527 = vld [vmem:[#allocation5 + $0xd70] sm:$0xff]
    %v528 = vld [vmem:[#allocation5 + $0xd78] sm:$0xff]
    %v529 = vld [vmem:[#allocation5 + $0xd80] sm:$0xff]
    %v530 = vld [vmem:[#allocation5 + $0xd88] sm:$0xff]
    %v531 = vld [vmem:[#allocation5 + $0xd90] sm:$0xff]
    %v532 = vld [vmem:[#allocation5 + $0xd98] sm:$0xff]
    %v533 = vld [vmem:[#allocation5 + $0xda0] sm:$0xff]
    %v534 = vld [vmem:[#allocation5 + $0xda8] sm:$0xff]
    %v535 = vld [vmem:[#allocation5 + $0xdb0] sm:$0xff]
    %v536 = vld [vmem:[#allocation5 + $0xdb8] sm:$0xff]
    %v537 = vld [vmem:[#allocation5 + $0xdc0] sm:$0xff]
    %v538 = vld [vmem:[#allocation5 + $0xdc8] sm:$0xff]
    %v539 = vld [vmem:[#allocation5 + $0xdd0] sm:$0xff]
    %v540 = vld [vmem:[#allocation5 + $0xdd8] sm:$0xff]
    %v541 = vld [vmem:[#allocation5 + $0xde0] sm:$0xff]
    %v542 = vld [vmem:[#allocation5 + $0xde8] sm:$0xff]
    %v543 = vld [vmem:[#allocation5 + $0xdf0] sm:$0xff]
    %v544 = vld [vmem:[#allocation5 + $0xdf8] sm:$0xff]
    %v545 = vld [vmem:[#allocation5 + $0xe00] sm:$0xff]
    %v546 = vld [vmem:[#allocation5 + $0xe08] sm:$0xff]
    %v547 = vld [vmem:[#allocation5 + $0xe10] sm:$0xff]
    %v548 = vld [vmem:[#allocation5 + $0xe18] sm:$0xff]
    %v549 = vld [vmem:[#allocation5 + $0xe20] sm:$0xff]
    %v550 = vld [vmem:[#allocation5 + $0xe28] sm:$0xff]
    %v551 = vld [vmem:[#allocation5 + $0xe30] sm:$0xff]
    %v552 = vld [vmem:[#allocation5 + $0xe38] sm:$0xff]
    %v553 = vld [vmem:[#allocation5 + $0xe40] sm:$0xff]
    %v554 = vld [vmem:[#allocation5 + $0xe48] sm:$0xff]
    %v555 = vld [vmem:[#allocation5 + $0xe50] sm:$0xff]
    %v556 = vld [vmem:[#allocation5 + $0xe58] sm:$0xff]
    %v557 = vld [vmem:[#allocation5 + $0xe60] sm:$0xff]
    %v558 = vld [vmem:[#allocation5 + $0xe68] sm:$0xff]
    %v559 = vld [vmem:[#allocation5 + $0xe70] sm:$0xff]
    %v560 = vld [vmem:[#allocation5 + $0xe78] sm:$0xff]
    %v561 = vld [vmem:[#allocation5 + $0xe80] sm:$0xff]
    %v562 = vld [vmem:[#allocation5 + $0xe88] sm:$0xff]
    %v563 = vld [vmem:[#allocation5 + $0xe90] sm:$0xff]
    %v564 = vld [vmem:[#allocation5 + $0xe98] sm:$0xff]
    %v565 = vld [vmem:[#allocation5 + $0xea0] sm:$0xff]
    %v566 = vld [vmem:[#allocation5 + $0xea8] sm:$0xff]
    %v567 = vld [vmem:[#allocation5 + $0xeb0] sm:$0xff]
    %v568 = vld [vmem:[#allocation5 + $0xeb8] sm:$0xff]
    %v569 = vld [vmem:[#allocation5 + $0xec0] sm:$0xff]
    %v570 = vld [vmem:[#allocation5 + $0xec8] sm:$0xff]
    %v571 = vld [vmem:[#allocation5 + $0xed0] sm:$0xff]
    %v572 = vld [vmem:[#allocation5 + $0xed8] sm:$0xff]
    %v573 = vld [vmem:[#allocation5 + $0xee0] sm:$0xff]
    %v574 = vld [vmem:[#allocation5 + $0xee8] sm:$0xff]
    %v575 = vld [vmem:[#allocation5 + $0xef0] sm:$0xff]
    %v576 = vld [vmem:[#allocation5 + $0xef8] sm:$0xff]
    %v577 = vld [vmem:[#allocation5 + $0xf00] sm:$0xff]
    %v578 = vld [vmem:[#allocation5 + $0xf08] sm:$0xff]
    %v579 = vld [vmem:[#allocation5 + $0xf10] sm:$0xff]
    %v580 = vld [vmem:[#allocation5 + $0xf18] sm:$0xff]
    %v581 = vld [vmem:[#allocation5 + $0xf20] sm:$0xff]
    %v582 = vld [vmem:[#allocation5 + $0xf28] sm:$0xff]
    %v583 = vld [vmem:[#allocation5 + $0xf30] sm:$0xff]
    %v584 = vld [vmem:[#allocation5 + $0xf38] sm:$0xff]
    %v585 = vld [vmem:[#allocation5 + $0xf40] sm:$0xff]
    %v586 = vld [vmem:[#allocation5 + $0xf48] sm:$0xff]
    %v587 = vld [vmem:[#allocation5 + $0xf50] sm:$0xff]
    %v588 = vld [vmem:[#allocation5 + $0xf58] sm:$0xff]
    %v589 = vld [vmem:[#allocation5 + $0xf60] sm:$0xff]
    %v590 = vld [vmem:[#allocation5 + $0xf68] sm:$0xff]
    %v591 = vld [vmem:[#allocation5 + $0xf70] sm:$0xff]
    %v592 = vld [vmem:[#allocation5 + $0xf78] sm:$0xff]
    %v593 = vld [vmem:[#allocation5 + $0xf80] sm:$0xff]
    %v594 = vld [vmem:[#allocation5 + $0xf88] sm:$0xff]
    %v595 = vld [vmem:[#allocation5 + $0xf90] sm:$0xff]
    %v596 = vld [vmem:[#allocation5 + $0xf98] sm:$0xff]
    %v597 = vld [vmem:[#allocation5 + $0xfa0] sm:$0xff]
    %v598 = vld [vmem:[#allocation5 + $0xfa8] sm:$0xff]
    %v599 = vld [vmem:[#allocation5 + $0xfb0] sm:$0xff]
    %v600 = vld [vmem:[#allocation5 + $0xfb8] sm:$0xff]
    %v601 = vld [vmem:[#allocation5 + $0xfc0] sm:$0xff]
    %v602 = vld [vmem:[#allocation5 + $0xfc8] sm:$0xff]
    %v603 = vld [vmem:[#allocation5 + $0xfd0] sm:$0xff]
    %v604 = vld [vmem:[#allocation5 + $0xfd8] sm:$0xff]
    %v605 = vld [vmem:[#allocation5 + $0xfe0] sm:$0xff]
    %v606 = vld [vmem:[#allocation5 + $0xfe8] sm:$0xff]
    %v607 = vld [vmem:[#allocation5 + $0xff0] sm:$0xff]
    %v608 = vld [vmem:[#allocation5 + $0xff8] sm:$0xff]
    %v609 = vld [vmem:[#allocation7] sm:$0xff]
    %v611 = vperm.slane %v609, 0
    %v612 = vperm.slane %v609, 1
    %v613 = vperm.slane %v609, 2
    %v614 = vperm.slane %v609, 3
    %v615 = vperm.slane %v609, 4
    %v616 = vperm.slane %v609, 5
    %v617 = vperm.slane %v609, 6
    %v618 = vperm.slane %v609, 7
    %627 = vmatpush.msra.mxu0 %v217
    %628 = vmatpush.msra.mxu0 %v209
    %629 = vmatpush.msra.mxu0 %v201
    %630 = vmatpush.msra.mxu0 %v193
    %631 = vmatpush.msra.mxu0 %v185
    %632 = vmatpush.msra.mxu0 %v177
    %633 = vmatpush.msra.mxu0 %v169
    %634 = vmatpush.msra.mxu0 %v161
    %635 = vmatpush.msra.mxu0 %v153
    %636 = vmatpush.msra.mxu0 %v145
    %637 = vmatpush.msra.mxu0 %v137
    %638 = vmatpush.msra.mxu0 %v129
    %639 = vmatpush.msra.mxu0 %v121
    %640 = vmatpush.msra.mxu0 %v113
    %641 = vmatpush.msra.mxu0 %v105
    %642 = vmatpush.msra.mxu0 %v97
    %643 = vmatmul.f32.gmra.mxu0 %v93
    %v644 = vpop.f32.mrf.mxu0
    %v645 = vadd.f32 %v611, %v644
    %646 = vdwg.mxu0
    %647 = vmatpush.msra.mxu0 %v345
    %648 = vmatpush.msra.mxu0 %v337
    %649 = vmatpush.msra.mxu0 %v329
    %650 = vmatpush.msra.mxu0 %v321
    %651 = vmatpush.msra.mxu0 %v313
    %652 = vmatpush.msra.mxu0 %v305
    %653 = vmatpush.msra.mxu0 %v297
    %654 = vmatpush.msra.mxu0 %v289
    %655 = vmatpush.msra.mxu0 %v281
    %656 = vmatpush.msra.mxu0 %v273
    %657 = vmatpush.msra.mxu0 %v265
    %658 = vmatpush.msra.mxu0 %v257
    %659 = vmatpush.msra.mxu0 %v249
    %660 = vmatpush.msra.mxu0 %v241
    %661 = vmatpush.msra.mxu0 %v233
    %662 = vmatpush.msra.mxu0 %v225
    %663 = vmatmul.f32.gmra.mxu0 %v94
    %v664 = vpop.f32.mrf.mxu0
    %v665 = vadd.f32 %v645, %v664
    %666 = vdwg.mxu0
    %667 = vmatpush.msra.mxu0 %v473
    %668 = vmatpush.msra.mxu0 %v465
    %669 = vmatpush.msra.mxu0 %v457
    %670 = vmatpush.msra.mxu0 %v449
    %671 = vmatpush.msra.mxu0 %v441
    %672 = vmatpush.msra.mxu0 %v433
    %673 = vmatpush.msra.mxu0 %v425
    %674 = vmatpush.msra.mxu0 %v417
    %675 = vmatpush.msra.mxu0 %v409
    %676 = vmatpush.msra.mxu0 %v401
    %677 = vmatpush.msra.mxu0 %v393
    %678 = vmatpush.msra.mxu0 %v385
    %679 = vmatpush.msra.mxu0 %v377
    %680 = vmatpush.msra.mxu0 %v369
    %681 = vmatpush.msra.mxu0 %v361
    %682 = vmatpush.msra.mxu0 %v353
    %683 = vmatmul.f32.gmra.mxu0 %v95
    %v684 = vpop.f32.mrf.mxu0
    %v685 = vadd.f32 %v665, %v684
    %686 = vdwg.mxu0
    %687 = vmatpush.msra.mxu0 %v601
    %688 = vmatpush.msra.mxu0 %v593
    %689 = vmatpush.msra.mxu0 %v585
    %690 = vmatpush.msra.mxu0 %v577
    %691 = vmatpush.msra.mxu0 %v569
    %692 = vmatpush.msra.mxu0 %v561
    %693 = vmatpush.msra.mxu0 %v553
    %694 = vmatpush.msra.mxu0 %v545
    %695 = vmatpush.msra.mxu0 %v537
    %696 = vmatpush.msra.mxu0 %v529
    %697 = vmatpush.msra.mxu0 %v521
    %698 = vmatpush.msra.mxu0 %v513
    %699 = vmatpush.msra.mxu0 %v505
    %700 = vmatpush.msra.mxu0 %v497
    %701 = vmatpush.msra.mxu0 %v489
    %702 = vmatpush.msra.mxu0 %v481
    %703 = vmatmul.f32.gmra.mxu0 %v96
    %v704 = vpop.f32.mrf.mxu0
    %v705 = vadd.f32 %v685, %v704
    %706 = vdwg.mxu0
    %707 = vmatpush.msra.mxu0 %v218
    %708 = vmatpush.msra.mxu0 %v210
    %709 = vmatpush.msra.mxu0 %v202
    %710 = vmatpush.msra.mxu0 %v194
    %711 = vmatpush.msra.mxu0 %v186
    %712 = vmatpush.msra.mxu0 %v178
    %713 = vmatpush.msra.mxu0 %v170
    %714 = vmatpush.msra.mxu0 %v162
    %715 = vmatpush.msra.mxu0 %v154
    %716 = vmatpush.msra.mxu0 %v146
    %717 = vmatpush.msra.mxu0 %v138
    %718 = vmatpush.msra.mxu0 %v130
    %719 = vmatpush.msra.mxu0 %v122
    %720 = vmatpush.msra.mxu0 %v114
    %721 = vmatpush.msra.mxu0 %v106
    %722 = vmatpush.msra.mxu0 %v98
    %723 = vmatmul.f32.gmra.mxu0 %v93
    %v724 = vpop.f32.mrf.mxu0
    %v725 = vadd.f32 %v612, %v724
    %726 = vdwg.mxu0
    %727 = vmatpush.msra.mxu0 %v346
    %728 = vmatpush.msra.mxu0 %v338
    %729 = vmatpush.msra.mxu0 %v330
    %730 = vmatpush.msra.mxu0 %v322
    %731 = vmatpush.msra.mxu0 %v314
    %732 = vmatpush.msra.mxu0 %v306
    %733 = vmatpush.msra.mxu0 %v298
    %734 = vmatpush.msra.mxu0 %v290
    %735 = vmatpush.msra.mxu0 %v282
    %736 = vmatpush.msra.mxu0 %v274
    %737 = vmatpush.msra.mxu0 %v266
    %738 = vmatpush.msra.mxu0 %v258
    %739 = vmatpush.msra.mxu0 %v250
    %740 = vmatpush.msra.mxu0 %v242
    %741 = vmatpush.msra.mxu0 %v234
    %742 = vmatpush.msra.mxu0 %v226
    %743 = vmatmul.f32.gmra.mxu0 %v94
    %v744 = vpop.f32.mrf.mxu0
    %v745 = vadd.f32 %v725, %v744
    %746 = vdwg.mxu0
    %747 = vmatpush.msra.mxu0 %v474
    %748 = vmatpush.msra.mxu0 %v466
    %749 = vmatpush.msra.mxu0 %v458
    %750 = vmatpush.msra.mxu0 %v450
    %751 = vmatpush.msra.mxu0 %v442
    %752 = vmatpush.msra.mxu0 %v434
    %753 = vmatpush.msra.mxu0 %v426
    %754 = vmatpush.msra.mxu0 %v418
    %755 = vmatpush.msra.mxu0 %v410
    %756 = vmatpush.msra.mxu0 %v402
    %757 = vmatpush.msra.mxu0 %v394
    %758 = vmatpush.msra.mxu0 %v386
    %759 = vmatpush.msra.mxu0 %v378
    %760 = vmatpush.msra.mxu0 %v370
    %761 = vmatpush.msra.mxu0 %v362
    %762 = vmatpush.msra.mxu0 %v354
    %763 = vmatmul.f32.gmra.mxu0 %v95
    %v764 = vpop.f32.mrf.mxu0
    %v765 = vadd.f32 %v745, %v764
    %766 = vdwg.mxu0
    %767 = vmatpush.msra.mxu0 %v602
    %768 = vmatpush.msra.mxu0 %v594
    %769 = vmatpush.msra.mxu0 %v586
    %770 = vmatpush.msra.mxu0 %v578
    %771 = vmatpush.msra.mxu0 %v570
    %772 = vmatpush.msra.mxu0 %v562
    %773 = vmatpush.msra.mxu0 %v554
    %774 = vmatpush.msra.mxu0 %v546
    %775 = vmatpush.msra.mxu0 %v538
    %776 = vmatpush.msra.mxu0 %v530
    %777 = vmatpush.msra.mxu0 %v522
    %778 = vmatpush.msra.mxu0 %v514
    %779 = vmatpush.msra.mxu0 %v506
    %780 = vmatpush.msra.mxu0 %v498
    %781 = vmatpush.msra.mxu0 %v490
    %782 = vmatpush.msra.mxu0 %v482
    %783 = vmatmul.f32.gmra.mxu0 %v96
    %v784 = vpop.f32.mrf.mxu0
    %v785 = vadd.f32 %v765, %v784
    %786 = vdwg.mxu0
    %787 = vmatpush.msra.mxu0 %v219
    %788 = vmatpush.msra.mxu0 %v211
    %789 = vmatpush.msra.mxu0 %v203
    %790 = vmatpush.msra.mxu0 %v195
    %791 = vmatpush.msra.mxu0 %v187
    %792 = vmatpush.msra.mxu0 %v179
    %793 = vmatpush.msra.mxu0 %v171
    %794 = vmatpush.msra.mxu0 %v163
    %795 = vmatpush.msra.mxu0 %v155
    %796 = vmatpush.msra.mxu0 %v147
    %797 = vmatpush.msra.mxu0 %v139
    %798 = vmatpush.msra.mxu0 %v131
    %799 = vmatpush.msra.mxu0 %v123
    %800 = vmatpush.msra.mxu0 %v115
    %801 = vmatpush.msra.mxu0 %v107
    %802 = vmatpush.msra.mxu0 %v99
    %803 = vmatmul.f32.gmra.mxu0 %v93
    %v804 = vpop.f32.mrf.mxu0
    %v805 = vadd.f32 %v613, %v804
    %806 = vdwg.mxu0
    %807 = vmatpush.msra.mxu0 %v347
    %808 = vmatpush.msra.mxu0 %v339
    %809 = vmatpush.msra.mxu0 %v331
    %810 = vmatpush.msra.mxu0 %v323
    %811 = vmatpush.msra.mxu0 %v315
    %812 = vmatpush.msra.mxu0 %v307
    %813 = vmatpush.msra.mxu0 %v299
    %814 = vmatpush.msra.mxu0 %v291
    %815 = vmatpush.msra.mxu0 %v283
    %816 = vmatpush.msra.mxu0 %v275
    %817 = vmatpush.msra.mxu0 %v267
    %818 = vmatpush.msra.mxu0 %v259
    %819 = vmatpush.msra.mxu0 %v251
    %820 = vmatpush.msra.mxu0 %v243
    %821 = vmatpush.msra.mxu0 %v235
    %822 = vmatpush.msra.mxu0 %v227
    %823 = vmatmul.f32.gmra.mxu0 %v94
    %v824 = vpop.f32.mrf.mxu0
    %v825 = vadd.f32 %v805, %v824
    %826 = vdwg.mxu0
    %827 = vmatpush.msra.mxu0 %v475
    %828 = vmatpush.msra.mxu0 %v467
    %829 = vmatpush.msra.mxu0 %v459
    %830 = vmatpush.msra.mxu0 %v451
    %831 = vmatpush.msra.mxu0 %v443
    %832 = vmatpush.msra.mxu0 %v435
    %833 = vmatpush.msra.mxu0 %v427
    %834 = vmatpush.msra.mxu0 %v419
    %835 = vmatpush.msra.mxu0 %v411
    %836 = vmatpush.msra.mxu0 %v403
    %837 = vmatpush.msra.mxu0 %v395
    %838 = vmatpush.msra.mxu0 %v387
    %839 = vmatpush.msra.mxu0 %v379
    %840 = vmatpush.msra.mxu0 %v371
    %841 = vmatpush.msra.mxu0 %v363
    %842 = vmatpush.msra.mxu0 %v355
    %843 = vmatmul.f32.gmra.mxu0 %v95
    %v844 = vpop.f32.mrf.mxu0
    %v845 = vadd.f32 %v825, %v844
    %846 = vdwg.mxu0
    %847 = vmatpush.msra.mxu0 %v603
    %848 = vmatpush.msra.mxu0 %v595
    %849 = vmatpush.msra.mxu0 %v587
    %850 = vmatpush.msra.mxu0 %v579
    %851 = vmatpush.msra.mxu0 %v571
    %852 = vmatpush.msra.mxu0 %v563
    %853 = vmatpush.msra.mxu0 %v555
    %854 = vmatpush.msra.mxu0 %v547
    %855 = vmatpush.msra.mxu0 %v539
    %856 = vmatpush.msra.mxu0 %v531
    %857 = vmatpush.msra.mxu0 %v523
    %858 = vmatpush.msra.mxu0 %v515
    %859 = vmatpush.msra.mxu0 %v507
    %860 = vmatpush.msra.mxu0 %v499
    %861 = vmatpush.msra.mxu0 %v491
    %862 = vmatpush.msra.mxu0 %v483
    %863 = vmatmul.f32.gmra.mxu0 %v96
    %v864 = vpop.f32.mrf.mxu0
    %v865 = vadd.f32 %v845, %v864
    %866 = vdwg.mxu0
    %867 = vmatpush.msra.mxu0 %v220
    %868 = vmatpush.msra.mxu0 %v212
    %869 = vmatpush.msra.mxu0 %v204
    %870 = vmatpush.msra.mxu0 %v196
    %871 = vmatpush.msra.mxu0 %v188
    %872 = vmatpush.msra.mxu0 %v180
    %873 = vmatpush.msra.mxu0 %v172
    %874 = vmatpush.msra.mxu0 %v164
    %875 = vmatpush.msra.mxu0 %v156
    %876 = vmatpush.msra.mxu0 %v148
    %877 = vmatpush.msra.mxu0 %v140
    %878 = vmatpush.msra.mxu0 %v132
    %879 = vmatpush.msra.mxu0 %v124
    %880 = vmatpush.msra.mxu0 %v116
    %881 = vmatpush.msra.mxu0 %v108
    %882 = vmatpush.msra.mxu0 %v100
    %883 = vmatmul.f32.gmra.mxu0 %v93
    %v884 = vpop.f32.mrf.mxu0
    %v885 = vadd.f32 %v614, %v884
    %886 = vdwg.mxu0
    %887 = vmatpush.msra.mxu0 %v348
    %888 = vmatpush.msra.mxu0 %v340
    %889 = vmatpush.msra.mxu0 %v332
    %890 = vmatpush.msra.mxu0 %v324
    %891 = vmatpush.msra.mxu0 %v316
    %892 = vmatpush.msra.mxu0 %v308
    %893 = vmatpush.msra.mxu0 %v300
    %894 = vmatpush.msra.mxu0 %v292
    %895 = vmatpush.msra.mxu0 %v284
    %896 = vmatpush.msra.mxu0 %v276
    %897 = vmatpush.msra.mxu0 %v268
    %898 = vmatpush.msra.mxu0 %v260
    %899 = vmatpush.msra.mxu0 %v252
    %900 = vmatpush.msra.mxu0 %v244
    %901 = vmatpush.msra.mxu0 %v236
    %902 = vmatpush.msra.mxu0 %v228
    %903 = vmatmul.f32.gmra.mxu0 %v94
    %v904 = vpop.f32.mrf.mxu0
    %v905 = vadd.f32 %v885, %v904
    %906 = vdwg.mxu0
    %907 = vmatpush.msra.mxu0 %v476
    %908 = vmatpush.msra.mxu0 %v468
    %909 = vmatpush.msra.mxu0 %v460
    %910 = vmatpush.msra.mxu0 %v452
    %911 = vmatpush.msra.mxu0 %v444
    %912 = vmatpush.msra.mxu0 %v436
    %913 = vmatpush.msra.mxu0 %v428
    %914 = vmatpush.msra.mxu0 %v420
    %915 = vmatpush.msra.mxu0 %v412
    %916 = vmatpush.msra.mxu0 %v404
    %917 = vmatpush.msra.mxu0 %v396
    %918 = vmatpush.msra.mxu0 %v388
    %919 = vmatpush.msra.mxu0 %v380
    %920 = vmatpush.msra.mxu0 %v372
    %921 = vmatpush.msra.mxu0 %v364
    %922 = vmatpush.msra.mxu0 %v356
    %923 = vmatmul.f32.gmra.mxu0 %v95
    %v924 = vpop.f32.mrf.mxu0
    %v925 = vadd.f32 %v905, %v924
    %926 = vdwg.mxu0
    %927 = vmatpush.msra.mxu0 %v604
    %928 = vmatpush.msra.mxu0 %v596
    %929 = vmatpush.msra.mxu0 %v588
    %930 = vmatpush.msra.mxu0 %v580
    %931 = vmatpush.msra.mxu0 %v572
    %932 = vmatpush.msra.mxu0 %v564
    %933 = vmatpush.msra.mxu0 %v556
    %934 = vmatpush.msra.mxu0 %v548
    %935 = vmatpush.msra.mxu0 %v540
    %936 = vmatpush.msra.mxu0 %v532
    %937 = vmatpush.msra.mxu0 %v524
    %938 = vmatpush.msra.mxu0 %v516
    %939 = vmatpush.msra.mxu0 %v508
    %940 = vmatpush.msra.mxu0 %v500
    %941 = vmatpush.msra.mxu0 %v492
    %942 = vmatpush.msra.mxu0 %v484
    %943 = vmatmul.f32.gmra.mxu0 %v96
    %v944 = vpop.f32.mrf.mxu0
    %v945 = vadd.f32 %v925, %v944
    %946 = vdwg.mxu0
    %947 = vmatpush.msra.mxu0 %v221
    %948 = vmatpush.msra.mxu0 %v213
    %949 = vmatpush.msra.mxu0 %v205
    %950 = vmatpush.msra.mxu0 %v197
    %951 = vmatpush.msra.mxu0 %v189
    %952 = vmatpush.msra.mxu0 %v181
    %953 = vmatpush.msra.mxu0 %v173
    %954 = vmatpush.msra.mxu0 %v165
    %955 = vmatpush.msra.mxu0 %v157
    %956 = vmatpush.msra.mxu0 %v149
    %957 = vmatpush.msra.mxu0 %v141
    %958 = vmatpush.msra.mxu0 %v133
    %959 = vmatpush.msra.mxu0 %v125
    %960 = vmatpush.msra.mxu0 %v117
    %961 = vmatpush.msra.mxu0 %v109
    %962 = vmatpush.msra.mxu0 %v101
    %963 = vmatmul.f32.gmra.mxu0 %v93
    %v964 = vpop.f32.mrf.mxu0
    %v965 = vadd.f32 %v615, %v964
    %966 = vdwg.mxu0
    %967 = vmatpush.msra.mxu0 %v349
    %968 = vmatpush.msra.mxu0 %v341
    %969 = vmatpush.msra.mxu0 %v333
    %970 = vmatpush.msra.mxu0 %v325
    %971 = vmatpush.msra.mxu0 %v317
    %972 = vmatpush.msra.mxu0 %v309
    %973 = vmatpush.msra.mxu0 %v301
    %974 = vmatpush.msra.mxu0 %v293
    %975 = vmatpush.msra.mxu0 %v285
    %976 = vmatpush.msra.mxu0 %v277
    %977 = vmatpush.msra.mxu0 %v269
    %978 = vmatpush.msra.mxu0 %v261
    %979 = vmatpush.msra.mxu0 %v253
    %980 = vmatpush.msra.mxu0 %v245
    %981 = vmatpush.msra.mxu0 %v237
    %982 = vmatpush.msra.mxu0 %v229
    %983 = vmatmul.f32.gmra.mxu0 %v94
    %v984 = vpop.f32.mrf.mxu0
    %v985 = vadd.f32 %v965, %v984
    %986 = vdwg.mxu0
    %987 = vmatpush.msra.mxu0 %v477
    %988 = vmatpush.msra.mxu0 %v469
    %989 = vmatpush.msra.mxu0 %v461
    %990 = vmatpush.msra.mxu0 %v453
    %991 = vmatpush.msra.mxu0 %v445
    %992 = vmatpush.msra.mxu0 %v437
    %993 = vmatpush.msra.mxu0 %v429
    %994 = vmatpush.msra.mxu0 %v421
    %995 = vmatpush.msra.mxu0 %v413
    %996 = vmatpush.msra.mxu0 %v405
    %997 = vmatpush.msra.mxu0 %v397
    %998 = vmatpush.msra.mxu0 %v389
    %999 = vmatpush.msra.mxu0 %v381
    %1000 = vmatpush.msra.mxu0 %v373
    %1001 = vmatpush.msra.mxu0 %v365
    %1002 = vmatpush.msra.mxu0 %v357
    %1003 = vmatmul.f32.gmra.mxu0 %v95
    %v1004 = vpop.f32.mrf.mxu0
    %v1005 = vadd.f32 %v985, %v1004
    %1006 = vdwg.mxu0
    %1007 = vmatpush.msra.mxu0 %v605
    %1008 = vmatpush.msra.mxu0 %v597
    %1009 = vmatpush.msra.mxu0 %v589
    %1010 = vmatpush.msra.mxu0 %v581
    %1011 = vmatpush.msra.mxu0 %v573
    %1012 = vmatpush.msra.mxu0 %v565
    %1013 = vmatpush.msra.mxu0 %v557
    %1014 = vmatpush.msra.mxu0 %v549
    %1015 = vmatpush.msra.mxu0 %v541
    %1016 = vmatpush.msra.mxu0 %v533
    %1017 = vmatpush.msra.mxu0 %v525
    %1018 = vmatpush.msra.mxu0 %v517
    %1019 = vmatpush.msra.mxu0 %v509
    %1020 = vmatpush.msra.mxu0 %v501
    %1021 = vmatpush.msra.mxu0 %v493
    %1022 = vmatpush.msra.mxu0 %v485
    %1023 = vmatmul.f32.gmra.mxu0 %v96
    %v1024 = vpop.f32.mrf.mxu0
    %v1025 = vadd.f32 %v1005, %v1024
    %1026 = vdwg.mxu0
    %1027 = vmatpush.msra.mxu0 %v222
    %1028 = vmatpush.msra.mxu0 %v214
    %1029 = vmatpush.msra.mxu0 %v206
    %1030 = vmatpush.msra.mxu0 %v198
    %1031 = vmatpush.msra.mxu0 %v190
    %1032 = vmatpush.msra.mxu0 %v182
    %1033 = vmatpush.msra.mxu0 %v174
    %1034 = vmatpush.msra.mxu0 %v166
    %1035 = vmatpush.msra.mxu0 %v158
    %1036 = vmatpush.msra.mxu0 %v150
    %1037 = vmatpush.msra.mxu0 %v142
    %1038 = vmatpush.msra.mxu0 %v134
    %1039 = vmatpush.msra.mxu0 %v126
    %1040 = vmatpush.msra.mxu0 %v118
    %1041 = vmatpush.msra.mxu0 %v110
    %1042 = vmatpush.msra.mxu0 %v102
    %1043 = vmatmul.f32.gmra.mxu0 %v93
    %v1044 = vpop.f32.mrf.mxu0
    %v1045 = vadd.f32 %v616, %v1044
    %1046 = vdwg.mxu0
    %1047 = vmatpush.msra.mxu0 %v350
    %1048 = vmatpush.msra.mxu0 %v342
    %1049 = vmatpush.msra.mxu0 %v334
    %1050 = vmatpush.msra.mxu0 %v326
    %1051 = vmatpush.msra.mxu0 %v318
    %1052 = vmatpush.msra.mxu0 %v310
    %1053 = vmatpush.msra.mxu0 %v302
    %1054 = vmatpush.msra.mxu0 %v294
    %1055 = vmatpush.msra.mxu0 %v286
    %1056 = vmatpush.msra.mxu0 %v278
    %1057 = vmatpush.msra.mxu0 %v270
    %1058 = vmatpush.msra.mxu0 %v262
    %1059 = vmatpush.msra.mxu0 %v254
    %1060 = vmatpush.msra.mxu0 %v246
    %1061 = vmatpush.msra.mxu0 %v238
    %1062 = vmatpush.msra.mxu0 %v230
    %1063 = vmatmul.f32.gmra.mxu0 %v94
    %v1064 = vpop.f32.mrf.mxu0
    %v1065 = vadd.f32 %v1045, %v1064
    %1066 = vdwg.mxu0
    %1067 = vmatpush.msra.mxu0 %v478
    %1068 = vmatpush.msra.mxu0 %v470
    %1069 = vmatpush.msra.mxu0 %v462
    %1070 = vmatpush.msra.mxu0 %v454
    %1071 = vmatpush.msra.mxu0 %v446
    %1072 = vmatpush.msra.mxu0 %v438
    %1073 = vmatpush.msra.mxu0 %v430
    %1074 = vmatpush.msra.mxu0 %v422
    %1075 = vmatpush.msra.mxu0 %v414
    %1076 = vmatpush.msra.mxu0 %v406
    %1077 = vmatpush.msra.mxu0 %v398
    %1078 = vmatpush.msra.mxu0 %v390
    %1079 = vmatpush.msra.mxu0 %v382
    %1080 = vmatpush.msra.mxu0 %v374
    %1081 = vmatpush.msra.mxu0 %v366
    %1082 = vmatpush.msra.mxu0 %v358
    %1083 = vmatmul.f32.gmra.mxu0 %v95
    %v1084 = vpop.f32.mrf.mxu0
    %v1085 = vadd.f32 %v1065, %v1084
    %1086 = vdwg.mxu0
    %1087 = vmatpush.msra.mxu0 %v606
    %1088 = vmatpush.msra.mxu0 %v598
    %1089 = vmatpush.msra.mxu0 %v590
    %1090 = vmatpush.msra.mxu0 %v582
    %1091 = vmatpush.msra.mxu0 %v574
    %1092 = vmatpush.msra.mxu0 %v566
    %1093 = vmatpush.msra.mxu0 %v558
    %1094 = vmatpush.msra.mxu0 %v550
    %1095 = vmatpush.msra.mxu0 %v542
    %1096 = vmatpush.msra.mxu0 %v534
    %1097 = vmatpush.msra.mxu0 %v526
    %1098 = vmatpush.msra.mxu0 %v518
    %1099 = vmatpush.msra.mxu0 %v510
    %1100 = vmatpush.msra.mxu0 %v502
    %1101 = vmatpush.msra.mxu0 %v494
    %1102 = vmatpush.msra.mxu0 %v486
    %1103 = vmatmul.f32.gmra.mxu0 %v96
    %v1104 = vpop.f32.mrf.mxu0
    %v1105 = vadd.f32 %v1085, %v1104
    %1106 = vdwg.mxu0
    %1107 = vmatpush.msra.mxu0 %v223
    %1108 = vmatpush.msra.mxu0 %v215
    %1109 = vmatpush.msra.mxu0 %v207
    %1110 = vmatpush.msra.mxu0 %v199
    %1111 = vmatpush.msra.mxu0 %v191
    %1112 = vmatpush.msra.mxu0 %v183
    %1113 = vmatpush.msra.mxu0 %v175
    %1114 = vmatpush.msra.mxu0 %v167
    %1115 = vmatpush.msra.mxu0 %v159
    %1116 = vmatpush.msra.mxu0 %v151
    %1117 = vmatpush.msra.mxu0 %v143
    %1118 = vmatpush.msra.mxu0 %v135
    %1119 = vmatpush.msra.mxu0 %v127
    %1120 = vmatpush.msra.mxu0 %v119
    %1121 = vmatpush.msra.mxu0 %v111
    %1122 = vmatpush.msra.mxu0 %v103
    %1123 = vmatmul.f32.gmra.mxu0 %v93
    %v1124 = vpop.f32.mrf.mxu0
    %v1125 = vadd.f32 %v617, %v1124
    %1126 = vdwg.mxu0
    %1127 = vmatpush.msra.mxu0 %v351
    %1128 = vmatpush.msra.mxu0 %v343
    %1129 = vmatpush.msra.mxu0 %v335
    %1130 = vmatpush.msra.mxu0 %v327
    %1131 = vmatpush.msra.mxu0 %v319
    %1132 = vmatpush.msra.mxu0 %v311
    %1133 = vmatpush.msra.mxu0 %v303
    %1134 = vmatpush.msra.mxu0 %v295
    %1135 = vmatpush.msra.mxu0 %v287
    %1136 = vmatpush.msra.mxu0 %v279
    %1137 = vmatpush.msra.mxu0 %v271
    %1138 = vmatpush.msra.mxu0 %v263
    %1139 = vmatpush.msra.mxu0 %v255
    %1140 = vmatpush.msra.mxu0 %v247
    %1141 = vmatpush.msra.mxu0 %v239
    %1142 = vmatpush.msra.mxu0 %v231
    %1143 = vmatmul.f32.gmra.mxu0 %v94
    %v1144 = vpop.f32.mrf.mxu0
    %v1145 = vadd.f32 %v1125, %v1144
    %1146 = vdwg.mxu0
    %1147 = vmatpush.msra.mxu0 %v479
    %1148 = vmatpush.msra.mxu0 %v471
    %1149 = vmatpush.msra.mxu0 %v463
    %1150 = vmatpush.msra.mxu0 %v455
    %1151 = vmatpush.msra.mxu0 %v447
    %1152 = vmatpush.msra.mxu0 %v439
    %1153 = vmatpush.msra.mxu0 %v431
    %1154 = vmatpush.msra.mxu0 %v423
    %1155 = vmatpush.msra.mxu0 %v415
    %1156 = vmatpush.msra.mxu0 %v407
    %1157 = vmatpush.msra.mxu0 %v399
    %1158 = vmatpush.msra.mxu0 %v391
    %1159 = vmatpush.msra.mxu0 %v383
    %1160 = vmatpush.msra.mxu0 %v375
    %1161 = vmatpush.msra.mxu0 %v367
    %1162 = vmatpush.msra.mxu0 %v359
    %1163 = vmatmul.f32.gmra.mxu0 %v95
    %v1164 = vpop.f32.mrf.mxu0
    %v1165 = vadd.f32 %v1145, %v1164
    %1166 = vdwg.mxu0
    %1167 = vmatpush.msra.mxu0 %v607
    %1168 = vmatpush.msra.mxu0 %v599
    %1169 = vmatpush.msra.mxu0 %v591
    %1170 = vmatpush.msra.mxu0 %v583
    %1171 = vmatpush.msra.mxu0 %v575
    %1172 = vmatpush.msra.mxu0 %v567
    %1173 = vmatpush.msra.mxu0 %v559
    %1174 = vmatpush.msra.mxu0 %v551
    %1175 = vmatpush.msra.mxu0 %v543
    %1176 = vmatpush.msra.mxu0 %v535
    %1177 = vmatpush.msra.mxu0 %v527
    %1178 = vmatpush.msra.mxu0 %v519
    %1179 = vmatpush.msra.mxu0 %v511
    %1180 = vmatpush.msra.mxu0 %v503
    %1181 = vmatpush.msra.mxu0 %v495
    %1182 = vmatpush.msra.mxu0 %v487
    %1183 = vmatmul.f32.gmra.mxu0 %v96
    %v1184 = vpop.f32.mrf.mxu0
    %v1185 = vadd.f32 %v1165, %v1184
    %1186 = vdwg.mxu0
    %1187 = vmatpush.msra.mxu0 %v224
    %1188 = vmatpush.msra.mxu0 %v216
    %1189 = vmatpush.msra.mxu0 %v208
    %1190 = vmatpush.msra.mxu0 %v200
    %1191 = vmatpush.msra.mxu0 %v192
    %1192 = vmatpush.msra.mxu0 %v184
    %1193 = vmatpush.msra.mxu0 %v176
    %1194 = vmatpush.msra.mxu0 %v168
    %1195 = vmatpush.msra.mxu0 %v160
    %1196 = vmatpush.msra.mxu0 %v152
    %1197 = vmatpush.msra.mxu0 %v144
    %1198 = vmatpush.msra.mxu0 %v136
    %1199 = vmatpush.msra.mxu0 %v128
    %1200 = vmatpush.msra.mxu0 %v120
    %1201 = vmatpush.msra.mxu0 %v112
    %1202 = vmatpush.msra.mxu0 %v104
    %1203 = vmatmul.f32.gmra.mxu0 %v93
    %v1204 = vpop.f32.mrf.mxu0
    %v1205 = vadd.f32 %v618, %v1204
    %1206 = vdwg.mxu0
    %1207 = vmatpush.msra.mxu0 %v352
    %1208 = vmatpush.msra.mxu0 %v344
    %1209 = vmatpush.msra.mxu0 %v336
    %1210 = vmatpush.msra.mxu0 %v328
    %1211 = vmatpush.msra.mxu0 %v320
    %1212 = vmatpush.msra.mxu0 %v312
    %1213 = vmatpush.msra.mxu0 %v304
    %1214 = vmatpush.msra.mxu0 %v296
    %1215 = vmatpush.msra.mxu0 %v288
    %1216 = vmatpush.msra.mxu0 %v280
    %1217 = vmatpush.msra.mxu0 %v272
    %1218 = vmatpush.msra.mxu0 %v264
    %1219 = vmatpush.msra.mxu0 %v256
    %1220 = vmatpush.msra.mxu0 %v248
    %1221 = vmatpush.msra.mxu0 %v240
    %1222 = vmatpush.msra.mxu0 %v232
    %1223 = vmatmul.f32.gmra.mxu0 %v94
    %v1224 = vpop.f32.mrf.mxu0
    %v1225 = vadd.f32 %v1205, %v1224
    %1226 = vdwg.mxu0
    %1227 = vmatpush.msra.mxu0 %v480
    %1228 = vmatpush.msra.mxu0 %v472
    %1229 = vmatpush.msra.mxu0 %v464
    %1230 = vmatpush.msra.mxu0 %v456
    %1231 = vmatpush.msra.mxu0 %v448
    %1232 = vmatpush.msra.mxu0 %v440
    %1233 = vmatpush.msra.mxu0 %v432
    %1234 = vmatpush.msra.mxu0 %v424
    %1235 = vmatpush.msra.mxu0 %v416
    %1236 = vmatpush.msra.mxu0 %v408
    %1237 = vmatpush.msra.mxu0 %v400
    %1238 = vmatpush.msra.mxu0 %v392
    %1239 = vmatpush.msra.mxu0 %v384
    %1240 = vmatpush.msra.mxu0 %v376
    %1241 = vmatpush.msra.mxu0 %v368
    %1242 = vmatpush.msra.mxu0 %v360
    %1243 = vmatmul.f32.gmra.mxu0 %v95
    %v1244 = vpop.f32.mrf.mxu0
    %v1245 = vadd.f32 %v1225, %v1244
    %1246 = vdwg.mxu0
    %1247 = vmatpush.msra.mxu0 %v608
    %1248 = vmatpush.msra.mxu0 %v600
    %1249 = vmatpush.msra.mxu0 %v592
    %1250 = vmatpush.msra.mxu0 %v584
    %1251 = vmatpush.msra.mxu0 %v576
    %1252 = vmatpush.msra.mxu0 %v568
    %1253 = vmatpush.msra.mxu0 %v560
    %1254 = vmatpush.msra.mxu0 %v552
    %1255 = vmatpush.msra.mxu0 %v544
    %1256 = vmatpush.msra.mxu0 %v536
    %1257 = vmatpush.msra.mxu0 %v528
    %1258 = vmatpush.msra.mxu0 %v520
    %1259 = vmatpush.msra.mxu0 %v512
    %1260 = vmatpush.msra.mxu0 %v504
    %1261 = vmatpush.msra.mxu0 %v496
    %1262 = vmatpush.msra.mxu0 %v488
    %1263 = vmatmul.f32.gmra.mxu0 %v96
    %v1264 = vpop.f32.mrf.mxu0
    %v1265 = vadd.f32 %v1245, %v1264
    %1266 = vdwg.mxu0
    %v1267 = vmax.f32 %v705, 0.0
    %v1268 = vmax.f32 %v785, 0.0
    %v1269 = vmax.f32 %v865, 0.0
    %v1270 = vmax.f32 %v945, 0.0
    %v1271 = vmax.f32 %v1025, 0.0
    %v1272 = vmax.f32 %v1105, 0.0
    %v1273 = vmax.f32 %v1185, 0.0
    %v1274 = vmax.f32 %v1265, 0.0
    %v1275 = vld [vmem:[#allocation8] sm:$0xff]
    %v1276 = vld [vmem:[#allocation8 + $0x8] sm:$0xff]
    %v1277 = vld [vmem:[#allocation8 + $0x10] sm:$0xff]
    %v1278 = vld [vmem:[#allocation8 + $0x18] sm:$0xff]
    %v1279 = vld [vmem:[#allocation8 + $0x20] sm:$0xff]
    %v1280 = vld [vmem:[#allocation8 + $0x28] sm:$0xff]
    %v1281 = vld [vmem:[#allocation8 + $0x30] sm:$0xff]
    %v1282 = vld [vmem:[#allocation8 + $0x38] sm:$0xff]
    %v1283 = vld [vmem:[#allocation8 + $0x40] sm:$0xff]
    %v1284 = vld [vmem:[#allocation8 + $0x48] sm:$0xff]
    %v1285 = vld [vmem:[#allocation8 + $0x50] sm:$0xff]
    %v1286 = vld [vmem:[#allocation8 + $0x58] sm:$0xff]
    %v1287 = vld [vmem:[#allocation8 + $0x60] sm:$0xff]
    %v1288 = vld [vmem:[#allocation8 + $0x68] sm:$0xff]
    %v1289 = vld [vmem:[#allocation8 + $0x70] sm:$0xff]
    %v1290 = vld [vmem:[#allocation8 + $0x78] sm:$0xff]
    %v1291 = vld [vmem:[#allocation8 + $0x80] sm:$0xff]
    %v1292 = vld [vmem:[#allocation8 + $0x88] sm:$0xff]
    %v1293 = vld [vmem:[#allocation8 + $0x90] sm:$0xff]
    %v1294 = vld [vmem:[#allocation8 + $0x98] sm:$0xff]
    %v1295 = vld [vmem:[#allocation8 + $0xa0] sm:$0xff]
    %v1296 = vld [vmem:[#allocation8 + $0xa8] sm:$0xff]
    %v1297 = vld [vmem:[#allocation8 + $0xb0] sm:$0xff]
    %v1298 = vld [vmem:[#allocation8 + $0xb8] sm:$0xff]
    %v1299 = vld [vmem:[#allocation8 + $0xc0] sm:$0xff]
    %v1300 = vld [vmem:[#allocation8 + $0xc8] sm:$0xff]
    %v1301 = vld [vmem:[#allocation8 + $0xd0] sm:$0xff]
    %v1302 = vld [vmem:[#allocation8 + $0xd8] sm:$0xff]
    %v1303 = vld [vmem:[#allocation8 + $0xe0] sm:$0xff]
    %v1304 = vld [vmem:[#allocation8 + $0xe8] sm:$0xff]
    %v1305 = vld [vmem:[#allocation8 + $0xf0] sm:$0xff]
    %v1306 = vld [vmem:[#allocation8 + $0xf8] sm:$0xff]
    %v1307 = vld [vmem:[#allocation8 + $0x100] sm:$0xff]
    %v1308 = vld [vmem:[#allocation8 + $0x108] sm:$0xff]
    %v1309 = vld [vmem:[#allocation8 + $0x110] sm:$0xff]
    %v1310 = vld [vmem:[#allocation8 + $0x118] sm:$0xff]
    %v1311 = vld [vmem:[#allocation8 + $0x120] sm:$0xff]
    %v1312 = vld [vmem:[#allocation8 + $0x128] sm:$0xff]
    %v1313 = vld [vmem:[#allocation8 + $0x130] sm:$0xff]
    %v1314 = vld [vmem:[#allocation8 + $0x138] sm:$0xff]
    %v1315 = vld [vmem:[#allocation8 + $0x140] sm:$0xff]
    %v1316 = vld [vmem:[#allocation8 + $0x148] sm:$0xff]
    %v1317 = vld [vmem:[#allocation8 + $0x150] sm:$0xff]
    %v1318 = vld [vmem:[#allocation8 + $0x158] sm:$0xff]
    %v1319 = vld [vmem:[#allocation8 + $0x160] sm:$0xff]
    %v1320 = vld [vmem:[#allocation8 + $0x168] sm:$0xff]
    %v1321 = vld [vmem:[#allocation8 + $0x170] sm:$0xff]
    %v1322 = vld [vmem:[#allocation8 + $0x178] sm:$0xff]
    %v1323 = vld [vmem:[#allocation8 + $0x180] sm:$0xff]
    %v1324 = vld [vmem:[#allocation8 + $0x188] sm:$0xff]
    %v1325 = vld [vmem:[#allocation8 + $0x190] sm:$0xff]
    %v1326 = vld [vmem:[#allocation8 + $0x198] sm:$0xff]
    %v1327 = vld [vmem:[#allocation8 + $0x1a0] sm:$0xff]
    %v1328 = vld [vmem:[#allocation8 + $0x1a8] sm:$0xff]
    %v1329 = vld [vmem:[#allocation8 + $0x1b0] sm:$0xff]
    %v1330 = vld [vmem:[#allocation8 + $0x1b8] sm:$0xff]
    %v1331 = vld [vmem:[#allocation8 + $0x1c0] sm:$0xff]
    %v1332 = vld [vmem:[#allocation8 + $0x1c8] sm:$0xff]
    %v1333 = vld [vmem:[#allocation8 + $0x1d0] sm:$0xff]
    %v1334 = vld [vmem:[#allocation8 + $0x1d8] sm:$0xff]
    %v1335 = vld [vmem:[#allocation8 + $0x1e0] sm:$0xff]
    %v1336 = vld [vmem:[#allocation8 + $0x1e8] sm:$0xff]
    %v1337 = vld [vmem:[#allocation8 + $0x1f0] sm:$0xff]
    %v1338 = vld [vmem:[#allocation8 + $0x1f8] sm:$0xff]
    %v1339 = vld [vmem:[#allocation8 + $0x200] sm:$0xff]
    %v1340 = vld [vmem:[#allocation8 + $0x208] sm:$0xff]
    %v1341 = vld [vmem:[#allocation8 + $0x210] sm:$0xff]
    %v1342 = vld [vmem:[#allocation8 + $0x218] sm:$0xff]
    %v1343 = vld [vmem:[#allocation8 + $0x220] sm:$0xff]
    %v1344 = vld [vmem:[#allocation8 + $0x228] sm:$0xff]
    %v1345 = vld [vmem:[#allocation8 + $0x230] sm:$0xff]
    %v1346 = vld [vmem:[#allocation8 + $0x238] sm:$0xff]
    %v1347 = vld [vmem:[#allocation8 + $0x240] sm:$0xff]
    %v1348 = vld [vmem:[#allocation8 + $0x248] sm:$0xff]
    %v1349 = vld [vmem:[#allocation8 + $0x250] sm:$0xff]
    %v1350 = vld [vmem:[#allocation8 + $0x258] sm:$0xff]
    %v1351 = vld [vmem:[#allocation8 + $0x260] sm:$0xff]
    %v1352 = vld [vmem:[#allocation8 + $0x268] sm:$0xff]
    %v1353 = vld [vmem:[#allocation8 + $0x270] sm:$0xff]
    %v1354 = vld [vmem:[#allocation8 + $0x278] sm:$0xff]
    %v1355 = vld [vmem:[#allocation8 + $0x280] sm:$0xff]
    %v1356 = vld [vmem:[#allocation8 + $0x288] sm:$0xff]
    %v1357 = vld [vmem:[#allocation8 + $0x290] sm:$0xff]
    %v1358 = vld [vmem:[#allocation8 + $0x298] sm:$0xff]
    %v1359 = vld [vmem:[#allocation8 + $0x2a0] sm:$0xff]
    %v1360 = vld [vmem:[#allocation8 + $0x2a8] sm:$0xff]
    %v1361 = vld [vmem:[#allocation8 + $0x2b0] sm:$0xff]
    %v1362 = vld [vmem:[#allocation8 + $0x2b8] sm:$0xff]
    %v1363 = vld [vmem:[#allocation8 + $0x2c0] sm:$0xff]
    %v1364 = vld [vmem:[#allocation8 + $0x2c8] sm:$0xff]
    %v1365 = vld [vmem:[#allocation8 + $0x2d0] sm:$0xff]
    %v1366 = vld [vmem:[#allocation8 + $0x2d8] sm:$0xff]
    %v1367 = vld [vmem:[#allocation8 + $0x2e0] sm:$0xff]
    %v1368 = vld [vmem:[#allocation8 + $0x2e8] sm:$0xff]
    %v1369 = vld [vmem:[#allocation8 + $0x2f0] sm:$0xff]
    %v1370 = vld [vmem:[#allocation8 + $0x2f8] sm:$0xff]
    %v1371 = vld [vmem:[#allocation8 + $0x300] sm:$0xff]
    %v1372 = vld [vmem:[#allocation8 + $0x308] sm:$0xff]
    %v1373 = vld [vmem:[#allocation8 + $0x310] sm:$0xff]
    %v1374 = vld [vmem:[#allocation8 + $0x318] sm:$0xff]
    %v1375 = vld [vmem:[#allocation8 + $0x320] sm:$0xff]
    %v1376 = vld [vmem:[#allocation8 + $0x328] sm:$0xff]
    %v1377 = vld [vmem:[#allocation8 + $0x330] sm:$0xff]
    %v1378 = vld [vmem:[#allocation8 + $0x338] sm:$0xff]
    %v1379 = vld [vmem:[#allocation8 + $0x340] sm:$0xff]
    %v1380 = vld [vmem:[#allocation8 + $0x348] sm:$0xff]
    %v1381 = vld [vmem:[#allocation8 + $0x350] sm:$0xff]
    %v1382 = vld [vmem:[#allocation8 + $0x358] sm:$0xff]
    %v1383 = vld [vmem:[#allocation8 + $0x360] sm:$0xff]
    %v1384 = vld [vmem:[#allocation8 + $0x368] sm:$0xff]
    %v1385 = vld [vmem:[#allocation8 + $0x370] sm:$0xff]
    %v1386 = vld [vmem:[#allocation8 + $0x378] sm:$0xff]
    %v1387 = vld [vmem:[#allocation8 + $0x380] sm:$0xff]
    %v1388 = vld [vmem:[#allocation8 + $0x388] sm:$0xff]
    %v1389 = vld [vmem:[#allocation8 + $0x390] sm:$0xff]
    %v1390 = vld [vmem:[#allocation8 + $0x398] sm:$0xff]
    %v1391 = vld [vmem:[#allocation8 + $0x3a0] sm:$0xff]
    %v1392 = vld [vmem:[#allocation8 + $0x3a8] sm:$0xff]
    %v1393 = vld [vmem:[#allocation8 + $0x3b0] sm:$0xff]
    %v1394 = vld [vmem:[#allocation8 + $0x3b8] sm:$0xff]
    %v1395 = vld [vmem:[#allocation8 + $0x3c0] sm:$0xff]
    %v1396 = vld [vmem:[#allocation8 + $0x3c8] sm:$0xff]
    %v1397 = vld [vmem:[#allocation8 + $0x3d0] sm:$0xff]
    %v1398 = vld [vmem:[#allocation8 + $0x3d8] sm:$0xff]
    %v1399 = vld [vmem:[#allocation8 + $0x3e0] sm:$0xff]
    %v1400 = vld [vmem:[#allocation8 + $0x3e8] sm:$0xff]
    %v1401 = vld [vmem:[#allocation8 + $0x3f0] sm:$0xff]
    %v1402 = vld [vmem:[#allocation8 + $0x3f8] sm:$0xff]
    %v1403 = vld [vmem:[#allocation8 + $0x400] sm:$0xff]
    %v1404 = vld [vmem:[#allocation8 + $0x408] sm:$0xff]
    %v1405 = vld [vmem:[#allocation8 + $0x410] sm:$0xff]
    %v1406 = vld [vmem:[#allocation8 + $0x418] sm:$0xff]
    %v1407 = vld [vmem:[#allocation8 + $0x420] sm:$0xff]
    %v1408 = vld [vmem:[#allocation8 + $0x428] sm:$0xff]
    %v1409 = vld [vmem:[#allocation8 + $0x430] sm:$0xff]
    %v1410 = vld [vmem:[#allocation8 + $0x438] sm:$0xff]
    %v1411 = vld [vmem:[#allocation8 + $0x440] sm:$0xff]
    %v1412 = vld [vmem:[#allocation8 + $0x448] sm:$0xff]
    %v1413 = vld [vmem:[#allocation8 + $0x450] sm:$0xff]
    %v1414 = vld [vmem:[#allocation8 + $0x458] sm:$0xff]
    %v1415 = vld [vmem:[#allocation8 + $0x460] sm:$0xff]
    %v1416 = vld [vmem:[#allocation8 + $0x468] sm:$0xff]
    %v1417 = vld [vmem:[#allocation8 + $0x470] sm:$0xff]
    %v1418 = vld [vmem:[#allocation8 + $0x478] sm:$0xff]
    %v1419 = vld [vmem:[#allocation8 + $0x480] sm:$0xff]
    %v1420 = vld [vmem:[#allocation8 + $0x488] sm:$0xff]
    %v1421 = vld [vmem:[#allocation8 + $0x490] sm:$0xff]
    %v1422 = vld [vmem:[#allocation8 + $0x498] sm:$0xff]
    %v1423 = vld [vmem:[#allocation8 + $0x4a0] sm:$0xff]
    %v1424 = vld [vmem:[#allocation8 + $0x4a8] sm:$0xff]
    %v1425 = vld [vmem:[#allocation8 + $0x4b0] sm:$0xff]
    %v1426 = vld [vmem:[#allocation8 + $0x4b8] sm:$0xff]
    %v1427 = vld [vmem:[#allocation8 + $0x4c0] sm:$0xff]
    %v1428 = vld [vmem:[#allocation8 + $0x4c8] sm:$0xff]
    %v1429 = vld [vmem:[#allocation8 + $0x4d0] sm:$0xff]
    %v1430 = vld [vmem:[#allocation8 + $0x4d8] sm:$0xff]
    %v1431 = vld [vmem:[#allocation8 + $0x4e0] sm:$0xff]
    %v1432 = vld [vmem:[#allocation8 + $0x4e8] sm:$0xff]
    %v1433 = vld [vmem:[#allocation8 + $0x4f0] sm:$0xff]
    %v1434 = vld [vmem:[#allocation8 + $0x4f8] sm:$0xff]
    %v1435 = vld [vmem:[#allocation8 + $0x500] sm:$0xff]
    %v1436 = vld [vmem:[#allocation8 + $0x508] sm:$0xff]
    %v1437 = vld [vmem:[#allocation8 + $0x510] sm:$0xff]
    %v1438 = vld [vmem:[#allocation8 + $0x518] sm:$0xff]
    %v1439 = vld [vmem:[#allocation8 + $0x520] sm:$0xff]
    %v1440 = vld [vmem:[#allocation8 + $0x528] sm:$0xff]
    %v1441 = vld [vmem:[#allocation8 + $0x530] sm:$0xff]
    %v1442 = vld [vmem:[#allocation8 + $0x538] sm:$0xff]
    %v1443 = vld [vmem:[#allocation8 + $0x540] sm:$0xff]
    %v1444 = vld [vmem:[#allocation8 + $0x548] sm:$0xff]
    %v1445 = vld [vmem:[#allocation8 + $0x550] sm:$0xff]
    %v1446 = vld [vmem:[#allocation8 + $0x558] sm:$0xff]
    %v1447 = vld [vmem:[#allocation8 + $0x560] sm:$0xff]
    %v1448 = vld [vmem:[#allocation8 + $0x568] sm:$0xff]
    %v1449 = vld [vmem:[#allocation8 + $0x570] sm:$0xff]
    %v1450 = vld [vmem:[#allocation8 + $0x578] sm:$0xff]
    %v1451 = vld [vmem:[#allocation8 + $0x580] sm:$0xff]
    %v1452 = vld [vmem:[#allocation8 + $0x588] sm:$0xff]
    %v1453 = vld [vmem:[#allocation8 + $0x590] sm:$0xff]
    %v1454 = vld [vmem:[#allocation8 + $0x598] sm:$0xff]
    %v1455 = vld [vmem:[#allocation8 + $0x5a0] sm:$0xff]
    %v1456 = vld [vmem:[#allocation8 + $0x5a8] sm:$0xff]
    %v1457 = vld [vmem:[#allocation8 + $0x5b0] sm:$0xff]
    %v1458 = vld [vmem:[#allocation8 + $0x5b8] sm:$0xff]
    %v1459 = vld [vmem:[#allocation8 + $0x5c0] sm:$0xff]
    %v1460 = vld [vmem:[#allocation8 + $0x5c8] sm:$0xff]
    %v1461 = vld [vmem:[#allocation8 + $0x5d0] sm:$0xff]
    %v1462 = vld [vmem:[#allocation8 + $0x5d8] sm:$0xff]
    %v1463 = vld [vmem:[#allocation8 + $0x5e0] sm:$0xff]
    %v1464 = vld [vmem:[#allocation8 + $0x5e8] sm:$0xff]
    %v1465 = vld [vmem:[#allocation8 + $0x5f0] sm:$0xff]
    %v1466 = vld [vmem:[#allocation8 + $0x5f8] sm:$0xff]
    %v1467 = vld [vmem:[#allocation8 + $0x600] sm:$0xff]
    %v1468 = vld [vmem:[#allocation8 + $0x608] sm:$0xff]
    %v1469 = vld [vmem:[#allocation8 + $0x610] sm:$0xff]
    %v1470 = vld [vmem:[#allocation8 + $0x618] sm:$0xff]
    %v1471 = vld [vmem:[#allocation8 + $0x620] sm:$0xff]
    %v1472 = vld [vmem:[#allocation8 + $0x628] sm:$0xff]
    %v1473 = vld [vmem:[#allocation8 + $0x630] sm:$0xff]
    %v1474 = vld [vmem:[#allocation8 + $0x638] sm:$0xff]
    %v1475 = vld [vmem:[#allocation8 + $0x640] sm:$0xff]
    %v1476 = vld [vmem:[#allocation8 + $0x648] sm:$0xff]
    %v1477 = vld [vmem:[#allocation8 + $0x650] sm:$0xff]
    %v1478 = vld [vmem:[#allocation8 + $0x658] sm:$0xff]
    %v1479 = vld [vmem:[#allocation8 + $0x660] sm:$0xff]
    %v1480 = vld [vmem:[#allocation8 + $0x668] sm:$0xff]
    %v1481 = vld [vmem:[#allocation8 + $0x670] sm:$0xff]
    %v1482 = vld [vmem:[#allocation8 + $0x678] sm:$0xff]
    %v1483 = vld [vmem:[#allocation8 + $0x680] sm:$0xff]
    %v1484 = vld [vmem:[#allocation8 + $0x688] sm:$0xff]
    %v1485 = vld [vmem:[#allocation8 + $0x690] sm:$0xff]
    %v1486 = vld [vmem:[#allocation8 + $0x698] sm:$0xff]
    %v1487 = vld [vmem:[#allocation8 + $0x6a0] sm:$0xff]
    %v1488 = vld [vmem:[#allocation8 + $0x6a8] sm:$0xff]
    %v1489 = vld [vmem:[#allocation8 + $0x6b0] sm:$0xff]
    %v1490 = vld [vmem:[#allocation8 + $0x6b8] sm:$0xff]
    %v1491 = vld [vmem:[#allocation8 + $0x6c0] sm:$0xff]
    %v1492 = vld [vmem:[#allocation8 + $0x6c8] sm:$0xff]
    %v1493 = vld [vmem:[#allocation8 + $0x6d0] sm:$0xff]
    %v1494 = vld [vmem:[#allocation8 + $0x6d8] sm:$0xff]
    %v1495 = vld [vmem:[#allocation8 + $0x6e0] sm:$0xff]
    %v1496 = vld [vmem:[#allocation8 + $0x6e8] sm:$0xff]
    %v1497 = vld [vmem:[#allocation8 + $0x6f0] sm:$0xff]
    %v1498 = vld [vmem:[#allocation8 + $0x6f8] sm:$0xff]
    %v1499 = vld [vmem:[#allocation8 + $0x700] sm:$0xff]
    %v1500 = vld [vmem:[#allocation8 + $0x708] sm:$0xff]
    %v1501 = vld [vmem:[#allocation8 + $0x710] sm:$0xff]
    %v1502 = vld [vmem:[#allocation8 + $0x718] sm:$0xff]
    %v1503 = vld [vmem:[#allocation8 + $0x720] sm:$0xff]
    %v1504 = vld [vmem:[#allocation8 + $0x728] sm:$0xff]
    %v1505 = vld [vmem:[#allocation8 + $0x730] sm:$0xff]
    %v1506 = vld [vmem:[#allocation8 + $0x738] sm:$0xff]
    %v1507 = vld [vmem:[#allocation8 + $0x740] sm:$0xff]
    %v1508 = vld [vmem:[#allocation8 + $0x748] sm:$0xff]
    %v1509 = vld [vmem:[#allocation8 + $0x750] sm:$0xff]
    %v1510 = vld [vmem:[#allocation8 + $0x758] sm:$0xff]
    %v1511 = vld [vmem:[#allocation8 + $0x760] sm:$0xff]
    %v1512 = vld [vmem:[#allocation8 + $0x768] sm:$0xff]
    %v1513 = vld [vmem:[#allocation8 + $0x770] sm:$0xff]
    %v1514 = vld [vmem:[#allocation8 + $0x778] sm:$0xff]
    %v1515 = vld [vmem:[#allocation8 + $0x780] sm:$0xff]
    %v1516 = vld [vmem:[#allocation8 + $0x788] sm:$0xff]
    %v1517 = vld [vmem:[#allocation8 + $0x790] sm:$0xff]
    %v1518 = vld [vmem:[#allocation8 + $0x798] sm:$0xff]
    %v1519 = vld [vmem:[#allocation8 + $0x7a0] sm:$0xff]
    %v1520 = vld [vmem:[#allocation8 + $0x7a8] sm:$0xff]
    %v1521 = vld [vmem:[#allocation8 + $0x7b0] sm:$0xff]
    %v1522 = vld [vmem:[#allocation8 + $0x7b8] sm:$0xff]
    %v1523 = vld [vmem:[#allocation8 + $0x7c0] sm:$0xff]
    %v1524 = vld [vmem:[#allocation8 + $0x7c8] sm:$0xff]
    %v1525 = vld [vmem:[#allocation8 + $0x7d0] sm:$0xff]
    %v1526 = vld [vmem:[#allocation8 + $0x7d8] sm:$0xff]
    %v1527 = vld [vmem:[#allocation8 + $0x7e0] sm:$0xff]
    %v1528 = vld [vmem:[#allocation8 + $0x7e8] sm:$0xff]
    %v1529 = vld [vmem:[#allocation8 + $0x7f0] sm:$0xff]
    %v1530 = vld [vmem:[#allocation8 + $0x7f8] sm:$0xff]
    %v1531 = vld [vmem:[#allocation8 + $0x800] sm:$0xff]
    %v1532 = vld [vmem:[#allocation8 + $0x808] sm:$0xff]
    %v1533 = vld [vmem:[#allocation8 + $0x810] sm:$0xff]
    %v1534 = vld [vmem:[#allocation8 + $0x818] sm:$0xff]
    %v1535 = vld [vmem:[#allocation8 + $0x820] sm:$0xff]
    %v1536 = vld [vmem:[#allocation8 + $0x828] sm:$0xff]
    %v1537 = vld [vmem:[#allocation8 + $0x830] sm:$0xff]
    %v1538 = vld [vmem:[#allocation8 + $0x838] sm:$0xff]
    %v1539 = vld [vmem:[#allocation8 + $0x840] sm:$0xff]
    %v1540 = vld [vmem:[#allocation8 + $0x848] sm:$0xff]
    %v1541 = vld [vmem:[#allocation8 + $0x850] sm:$0xff]
    %v1542 = vld [vmem:[#allocation8 + $0x858] sm:$0xff]
    %v1543 = vld [vmem:[#allocation8 + $0x860] sm:$0xff]
    %v1544 = vld [vmem:[#allocation8 + $0x868] sm:$0xff]
    %v1545 = vld [vmem:[#allocation8 + $0x870] sm:$0xff]
    %v1546 = vld [vmem:[#allocation8 + $0x878] sm:$0xff]
    %v1547 = vld [vmem:[#allocation8 + $0x880] sm:$0xff]
    %v1548 = vld [vmem:[#allocation8 + $0x888] sm:$0xff]
    %v1549 = vld [vmem:[#allocation8 + $0x890] sm:$0xff]
    %v1550 = vld [vmem:[#allocation8 + $0x898] sm:$0xff]
    %v1551 = vld [vmem:[#allocation8 + $0x8a0] sm:$0xff]
    %v1552 = vld [vmem:[#allocation8 + $0x8a8] sm:$0xff]
    %v1553 = vld [vmem:[#allocation8 + $0x8b0] sm:$0xff]
    %v1554 = vld [vmem:[#allocation8 + $0x8b8] sm:$0xff]
    %v1555 = vld [vmem:[#allocation8 + $0x8c0] sm:$0xff]
    %v1556 = vld [vmem:[#allocation8 + $0x8c8] sm:$0xff]
    %v1557 = vld [vmem:[#allocation8 + $0x8d0] sm:$0xff]
    %v1558 = vld [vmem:[#allocation8 + $0x8d8] sm:$0xff]
    %v1559 = vld [vmem:[#allocation8 + $0x8e0] sm:$0xff]
    %v1560 = vld [vmem:[#allocation8 + $0x8e8] sm:$0xff]
    %v1561 = vld [vmem:[#allocation8 + $0x8f0] sm:$0xff]
    %v1562 = vld [vmem:[#allocation8 + $0x8f8] sm:$0xff]
    %v1563 = vld [vmem:[#allocation8 + $0x900] sm:$0xff]
    %v1564 = vld [vmem:[#allocation8 + $0x908] sm:$0xff]
    %v1565 = vld [vmem:[#allocation8 + $0x910] sm:$0xff]
    %v1566 = vld [vmem:[#allocation8 + $0x918] sm:$0xff]
    %v1567 = vld [vmem:[#allocation8 + $0x920] sm:$0xff]
    %v1568 = vld [vmem:[#allocation8 + $0x928] sm:$0xff]
    %v1569 = vld [vmem:[#allocation8 + $0x930] sm:$0xff]
    %v1570 = vld [vmem:[#allocation8 + $0x938] sm:$0xff]
    %v1571 = vld [vmem:[#allocation8 + $0x940] sm:$0xff]
    %v1572 = vld [vmem:[#allocation8 + $0x948] sm:$0xff]
    %v1573 = vld [vmem:[#allocation8 + $0x950] sm:$0xff]
    %v1574 = vld [vmem:[#allocation8 + $0x958] sm:$0xff]
    %v1575 = vld [vmem:[#allocation8 + $0x960] sm:$0xff]
    %v1576 = vld [vmem:[#allocation8 + $0x968] sm:$0xff]
    %v1577 = vld [vmem:[#allocation8 + $0x970] sm:$0xff]
    %v1578 = vld [vmem:[#allocation8 + $0x978] sm:$0xff]
    %v1579 = vld [vmem:[#allocation8 + $0x980] sm:$0xff]
    %v1580 = vld [vmem:[#allocation8 + $0x988] sm:$0xff]
    %v1581 = vld [vmem:[#allocation8 + $0x990] sm:$0xff]
    %v1582 = vld [vmem:[#allocation8 + $0x998] sm:$0xff]
    %v1583 = vld [vmem:[#allocation8 + $0x9a0] sm:$0xff]
    %v1584 = vld [vmem:[#allocation8 + $0x9a8] sm:$0xff]
    %v1585 = vld [vmem:[#allocation8 + $0x9b0] sm:$0xff]
    %v1586 = vld [vmem:[#allocation8 + $0x9b8] sm:$0xff]
    %v1587 = vld [vmem:[#allocation8 + $0x9c0] sm:$0xff]
    %v1588 = vld [vmem:[#allocation8 + $0x9c8] sm:$0xff]
    %v1589 = vld [vmem:[#allocation8 + $0x9d0] sm:$0xff]
    %v1590 = vld [vmem:[#allocation8 + $0x9d8] sm:$0xff]
    %v1591 = vld [vmem:[#allocation8 + $0x9e0] sm:$0xff]
    %v1592 = vld [vmem:[#allocation8 + $0x9e8] sm:$0xff]
    %v1593 = vld [vmem:[#allocation8 + $0x9f0] sm:$0xff]
    %v1594 = vld [vmem:[#allocation8 + $0x9f8] sm:$0xff]
    %v1595 = vld [vmem:[#allocation8 + $0xa00] sm:$0xff]
    %v1596 = vld [vmem:[#allocation8 + $0xa08] sm:$0xff]
    %v1597 = vld [vmem:[#allocation8 + $0xa10] sm:$0xff]
    %v1598 = vld [vmem:[#allocation8 + $0xa18] sm:$0xff]
    %v1599 = vld [vmem:[#allocation8 + $0xa20] sm:$0xff]
    %v1600 = vld [vmem:[#allocation8 + $0xa28] sm:$0xff]
    %v1601 = vld [vmem:[#allocation8 + $0xa30] sm:$0xff]
    %v1602 = vld [vmem:[#allocation8 + $0xa38] sm:$0xff]
    %v1603 = vld [vmem:[#allocation8 + $0xa40] sm:$0xff]
    %v1604 = vld [vmem:[#allocation8 + $0xa48] sm:$0xff]
    %v1605 = vld [vmem:[#allocation8 + $0xa50] sm:$0xff]
    %v1606 = vld [vmem:[#allocation8 + $0xa58] sm:$0xff]
    %v1607 = vld [vmem:[#allocation8 + $0xa60] sm:$0xff]
    %v1608 = vld [vmem:[#allocation8 + $0xa68] sm:$0xff]
    %v1609 = vld [vmem:[#allocation8 + $0xa70] sm:$0xff]
    %v1610 = vld [vmem:[#allocation8 + $0xa78] sm:$0xff]
    %v1611 = vld [vmem:[#allocation8 + $0xa80] sm:$0xff]
    %v1612 = vld [vmem:[#allocation8 + $0xa88] sm:$0xff]
    %v1613 = vld [vmem:[#allocation8 + $0xa90] sm:$0xff]
    %v1614 = vld [vmem:[#allocation8 + $0xa98] sm:$0xff]
    %v1615 = vld [vmem:[#allocation8 + $0xaa0] sm:$0xff]
    %v1616 = vld [vmem:[#allocation8 + $0xaa8] sm:$0xff]
    %v1617 = vld [vmem:[#allocation8 + $0xab0] sm:$0xff]
    %v1618 = vld [vmem:[#allocation8 + $0xab8] sm:$0xff]
    %v1619 = vld [vmem:[#allocation8 + $0xac0] sm:$0xff]
    %v1620 = vld [vmem:[#allocation8 + $0xac8] sm:$0xff]
    %v1621 = vld [vmem:[#allocation8 + $0xad0] sm:$0xff]
    %v1622 = vld [vmem:[#allocation8 + $0xad8] sm:$0xff]
    %v1623 = vld [vmem:[#allocation8 + $0xae0] sm:$0xff]
    %v1624 = vld [vmem:[#allocation8 + $0xae8] sm:$0xff]
    %v1625 = vld [vmem:[#allocation8 + $0xaf0] sm:$0xff]
    %v1626 = vld [vmem:[#allocation8 + $0xaf8] sm:$0xff]
    %v1627 = vld [vmem:[#allocation8 + $0xb00] sm:$0xff]
    %v1628 = vld [vmem:[#allocation8 + $0xb08] sm:$0xff]
    %v1629 = vld [vmem:[#allocation8 + $0xb10] sm:$0xff]
    %v1630 = vld [vmem:[#allocation8 + $0xb18] sm:$0xff]
    %v1631 = vld [vmem:[#allocation8 + $0xb20] sm:$0xff]
    %v1632 = vld [vmem:[#allocation8 + $0xb28] sm:$0xff]
    %v1633 = vld [vmem:[#allocation8 + $0xb30] sm:$0xff]
    %v1634 = vld [vmem:[#allocation8 + $0xb38] sm:$0xff]
    %v1635 = vld [vmem:[#allocation8 + $0xb40] sm:$0xff]
    %v1636 = vld [vmem:[#allocation8 + $0xb48] sm:$0xff]
    %v1637 = vld [vmem:[#allocation8 + $0xb50] sm:$0xff]
    %v1638 = vld [vmem:[#allocation8 + $0xb58] sm:$0xff]
    %v1639 = vld [vmem:[#allocation8 + $0xb60] sm:$0xff]
    %v1640 = vld [vmem:[#allocation8 + $0xb68] sm:$0xff]
    %v1641 = vld [vmem:[#allocation8 + $0xb70] sm:$0xff]
    %v1642 = vld [vmem:[#allocation8 + $0xb78] sm:$0xff]
    %v1643 = vld [vmem:[#allocation8 + $0xb80] sm:$0xff]
    %v1644 = vld [vmem:[#allocation8 + $0xb88] sm:$0xff]
    %v1645 = vld [vmem:[#allocation8 + $0xb90] sm:$0xff]
    %v1646 = vld [vmem:[#allocation8 + $0xb98] sm:$0xff]
    %v1647 = vld [vmem:[#allocation8 + $0xba0] sm:$0xff]
    %v1648 = vld [vmem:[#allocation8 + $0xba8] sm:$0xff]
    %v1649 = vld [vmem:[#allocation8 + $0xbb0] sm:$0xff]
    %v1650 = vld [vmem:[#allocation8 + $0xbb8] sm:$0xff]
    %v1651 = vld [vmem:[#allocation8 + $0xbc0] sm:$0xff]
    %v1652 = vld [vmem:[#allocation8 + $0xbc8] sm:$0xff]
    %v1653 = vld [vmem:[#allocation8 + $0xbd0] sm:$0xff]
    %v1654 = vld [vmem:[#allocation8 + $0xbd8] sm:$0xff]
    %v1655 = vld [vmem:[#allocation8 + $0xbe0] sm:$0xff]
    %v1656 = vld [vmem:[#allocation8 + $0xbe8] sm:$0xff]
    %v1657 = vld [vmem:[#allocation8 + $0xbf0] sm:$0xff]
    %v1658 = vld [vmem:[#allocation8 + $0xbf8] sm:$0xff]
    %v1659 = vld [vmem:[#allocation8 + $0xc00] sm:$0xff]
    %v1660 = vld [vmem:[#allocation8 + $0xc08] sm:$0xff]
    %v1661 = vld [vmem:[#allocation8 + $0xc10] sm:$0xff]
    %v1662 = vld [vmem:[#allocation8 + $0xc18] sm:$0xff]
    %v1663 = vld [vmem:[#allocation8 + $0xc20] sm:$0xff]
    %v1664 = vld [vmem:[#allocation8 + $0xc28] sm:$0xff]
    %v1665 = vld [vmem:[#allocation8 + $0xc30] sm:$0xff]
    %v1666 = vld [vmem:[#allocation8 + $0xc38] sm:$0xff]
    %v1667 = vld [vmem:[#allocation8 + $0xc40] sm:$0xff]
    %v1668 = vld [vmem:[#allocation8 + $0xc48] sm:$0xff]
    %v1669 = vld [vmem:[#allocation8 + $0xc50] sm:$0xff]
    %v1670 = vld [vmem:[#allocation8 + $0xc58] sm:$0xff]
    %v1671 = vld [vmem:[#allocation8 + $0xc60] sm:$0xff]
    %v1672 = vld [vmem:[#allocation8 + $0xc68] sm:$0xff]
    %v1673 = vld [vmem:[#allocation8 + $0xc70] sm:$0xff]
    %v1674 = vld [vmem:[#allocation8 + $0xc78] sm:$0xff]
    %v1675 = vld [vmem:[#allocation8 + $0xc80] sm:$0xff]
    %v1676 = vld [vmem:[#allocation8 + $0xc88] sm:$0xff]
    %v1677 = vld [vmem:[#allocation8 + $0xc90] sm:$0xff]
    %v1678 = vld [vmem:[#allocation8 + $0xc98] sm:$0xff]
    %v1679 = vld [vmem:[#allocation8 + $0xca0] sm:$0xff]
    %v1680 = vld [vmem:[#allocation8 + $0xca8] sm:$0xff]
    %v1681 = vld [vmem:[#allocation8 + $0xcb0] sm:$0xff]
    %v1682 = vld [vmem:[#allocation8 + $0xcb8] sm:$0xff]
    %v1683 = vld [vmem:[#allocation8 + $0xcc0] sm:$0xff]
    %v1684 = vld [vmem:[#allocation8 + $0xcc8] sm:$0xff]
    %v1685 = vld [vmem:[#allocation8 + $0xcd0] sm:$0xff]
    %v1686 = vld [vmem:[#allocation8 + $0xcd8] sm:$0xff]
    %v1687 = vld [vmem:[#allocation8 + $0xce0] sm:$0xff]
    %v1688 = vld [vmem:[#allocation8 + $0xce8] sm:$0xff]
    %v1689 = vld [vmem:[#allocation8 + $0xcf0] sm:$0xff]
    %v1690 = vld [vmem:[#allocation8 + $0xcf8] sm:$0xff]
    %v1691 = vld [vmem:[#allocation8 + $0xd00] sm:$0xff]
    %v1692 = vld [vmem:[#allocation8 + $0xd08] sm:$0xff]
    %v1693 = vld [vmem:[#allocation8 + $0xd10] sm:$0xff]
    %v1694 = vld [vmem:[#allocation8 + $0xd18] sm:$0xff]
    %v1695 = vld [vmem:[#allocation8 + $0xd20] sm:$0xff]
    %v1696 = vld [vmem:[#allocation8 + $0xd28] sm:$0xff]
    %v1697 = vld [vmem:[#allocation8 + $0xd30] sm:$0xff]
    %v1698 = vld [vmem:[#allocation8 + $0xd38] sm:$0xff]
    %v1699 = vld [vmem:[#allocation8 + $0xd40] sm:$0xff]
    %v1700 = vld [vmem:[#allocation8 + $0xd48] sm:$0xff]
    %v1701 = vld [vmem:[#allocation8 + $0xd50] sm:$0xff]
    %v1702 = vld [vmem:[#allocation8 + $0xd58] sm:$0xff]
    %v1703 = vld [vmem:[#allocation8 + $0xd60] sm:$0xff]
    %v1704 = vld [vmem:[#allocation8 + $0xd68] sm:$0xff]
    %v1705 = vld [vmem:[#allocation8 + $0xd70] sm:$0xff]
    %v1706 = vld [vmem:[#allocation8 + $0xd78] sm:$0xff]
    %v1707 = vld [vmem:[#allocation8 + $0xd80] sm:$0xff]
    %v1708 = vld [vmem:[#allocation8 + $0xd88] sm:$0xff]
    %v1709 = vld [vmem:[#allocation8 + $0xd90] sm:$0xff]
    %v1710 = vld [vmem:[#allocation8 + $0xd98] sm:$0xff]
    %v1711 = vld [vmem:[#allocation8 + $0xda0] sm:$0xff]
    %v1712 = vld [vmem:[#allocation8 + $0xda8] sm:$0xff]
    %v1713 = vld [vmem:[#allocation8 + $0xdb0] sm:$0xff]
    %v1714 = vld [vmem:[#allocation8 + $0xdb8] sm:$0xff]
    %v1715 = vld [vmem:[#allocation8 + $0xdc0] sm:$0xff]
    %v1716 = vld [vmem:[#allocation8 + $0xdc8] sm:$0xff]
    %v1717 = vld [vmem:[#allocation8 + $0xdd0] sm:$0xff]
    %v1718 = vld [vmem:[#allocation8 + $0xdd8] sm:$0xff]
    %v1719 = vld [vmem:[#allocation8 + $0xde0] sm:$0xff]
    %v1720 = vld [vmem:[#allocation8 + $0xde8] sm:$0xff]
    %v1721 = vld [vmem:[#allocation8 + $0xdf0] sm:$0xff]
    %v1722 = vld [vmem:[#allocation8 + $0xdf8] sm:$0xff]
    %v1723 = vld [vmem:[#allocation8 + $0xe00] sm:$0xff]
    %v1724 = vld [vmem:[#allocation8 + $0xe08] sm:$0xff]
    %v1725 = vld [vmem:[#allocation8 + $0xe10] sm:$0xff]
    %v1726 = vld [vmem:[#allocation8 + $0xe18] sm:$0xff]
    %v1727 = vld [vmem:[#allocation8 + $0xe20] sm:$0xff]
    %v1728 = vld [vmem:[#allocation8 + $0xe28] sm:$0xff]
    %v1729 = vld [vmem:[#allocation8 + $0xe30] sm:$0xff]
    %v1730 = vld [vmem:[#allocation8 + $0xe38] sm:$0xff]
    %v1731 = vld [vmem:[#allocation8 + $0xe40] sm:$0xff]
    %v1732 = vld [vmem:[#allocation8 + $0xe48] sm:$0xff]
    %v1733 = vld [vmem:[#allocation8 + $0xe50] sm:$0xff]
    %v1734 = vld [vmem:[#allocation8 + $0xe58] sm:$0xff]
    %v1735 = vld [vmem:[#allocation8 + $0xe60] sm:$0xff]
    %v1736 = vld [vmem:[#allocation8 + $0xe68] sm:$0xff]
    %v1737 = vld [vmem:[#allocation8 + $0xe70] sm:$0xff]
    %v1738 = vld [vmem:[#allocation8 + $0xe78] sm:$0xff]
    %v1739 = vld [vmem:[#allocation8 + $0xe80] sm:$0xff]
    %v1740 = vld [vmem:[#allocation8 + $0xe88] sm:$0xff]
    %v1741 = vld [vmem:[#allocation8 + $0xe90] sm:$0xff]
    %v1742 = vld [vmem:[#allocation8 + $0xe98] sm:$0xff]
    %v1743 = vld [vmem:[#allocation8 + $0xea0] sm:$0xff]
    %v1744 = vld [vmem:[#allocation8 + $0xea8] sm:$0xff]
    %v1745 = vld [vmem:[#allocation8 + $0xeb0] sm:$0xff]
    %v1746 = vld [vmem:[#allocation8 + $0xeb8] sm:$0xff]
    %v1747 = vld [vmem:[#allocation8 + $0xec0] sm:$0xff]
    %v1748 = vld [vmem:[#allocation8 + $0xec8] sm:$0xff]
    %v1749 = vld [vmem:[#allocation8 + $0xed0] sm:$0xff]
    %v1750 = vld [vmem:[#allocation8 + $0xed8] sm:$0xff]
    %v1751 = vld [vmem:[#allocation8 + $0xee0] sm:$0xff]
    %v1752 = vld [vmem:[#allocation8 + $0xee8] sm:$0xff]
    %v1753 = vld [vmem:[#allocation8 + $0xef0] sm:$0xff]
    %v1754 = vld [vmem:[#allocation8 + $0xef8] sm:$0xff]
    %v1755 = vld [vmem:[#allocation8 + $0xf00] sm:$0xff]
    %v1756 = vld [vmem:[#allocation8 + $0xf08] sm:$0xff]
    %v1757 = vld [vmem:[#allocation8 + $0xf10] sm:$0xff]
    %v1758 = vld [vmem:[#allocation8 + $0xf18] sm:$0xff]
    %v1759 = vld [vmem:[#allocation8 + $0xf20] sm:$0xff]
    %v1760 = vld [vmem:[#allocation8 + $0xf28] sm:$0xff]
    %v1761 = vld [vmem:[#allocation8 + $0xf30] sm:$0xff]
    %v1762 = vld [vmem:[#allocation8 + $0xf38] sm:$0xff]
    %v1763 = vld [vmem:[#allocation8 + $0xf40] sm:$0xff]
    %v1764 = vld [vmem:[#allocation8 + $0xf48] sm:$0xff]
    %v1765 = vld [vmem:[#allocation8 + $0xf50] sm:$0xff]
    %v1766 = vld [vmem:[#allocation8 + $0xf58] sm:$0xff]
    %v1767 = vld [vmem:[#allocation8 + $0xf60] sm:$0xff]
    %v1768 = vld [vmem:[#allocation8 + $0xf68] sm:$0xff]
    %v1769 = vld [vmem:[#allocation8 + $0xf70] sm:$0xff]
    %v1770 = vld [vmem:[#allocation8 + $0xf78] sm:$0xff]
    %v1771 = vld [vmem:[#allocation8 + $0xf80] sm:$0xff]
    %v1772 = vld [vmem:[#allocation8 + $0xf88] sm:$0xff]
    %v1773 = vld [vmem:[#allocation8 + $0xf90] sm:$0xff]
    %v1774 = vld [vmem:[#allocation8 + $0xf98] sm:$0xff]
    %v1775 = vld [vmem:[#allocation8 + $0xfa0] sm:$0xff]
    %v1776 = vld [vmem:[#allocation8 + $0xfa8] sm:$0xff]
    %v1777 = vld [vmem:[#allocation8 + $0xfb0] sm:$0xff]
    %v1778 = vld [vmem:[#allocation8 + $0xfb8] sm:$0xff]
    %v1779 = vld [vmem:[#allocation8 + $0xfc0] sm:$0xff]
    %v1780 = vld [vmem:[#allocation8 + $0xfc8] sm:$0xff]
    %v1781 = vld [vmem:[#allocation8 + $0xfd0] sm:$0xff]
    %v1782 = vld [vmem:[#allocation8 + $0xfd8] sm:$0xff]
    %v1783 = vld [vmem:[#allocation8 + $0xfe0] sm:$0xff]
    %v1784 = vld [vmem:[#allocation8 + $0xfe8] sm:$0xff]
    %v1785 = vld [vmem:[#allocation8 + $0xff0] sm:$0xff]
    %v1786 = vld [vmem:[#allocation8 + $0xff8] sm:$0xff]
    %v1787 = vld [vmem:[#allocation10] sm:$0xf]
    %v1789 = vperm.slane %v1787, 0
    %v1790 = vperm.slane %v1787, 1
    %v1791 = vperm.slane %v1787, 2
    %v1792 = vperm.slane %v1787, 3
    %1797 = vmatpush.msra.mxu0 %v1335
    %1798 = vmatpush.msra.mxu0 %v1331
    %1799 = vmatpush.msra.mxu0 %v1327
    %1800 = vmatpush.msra.mxu0 %v1323
    %1801 = vmatpush.msra.mxu0 %v1319
    %1802 = vmatpush.msra.mxu0 %v1315
    %1803 = vmatpush.msra.mxu0 %v1311
    %1804 = vmatpush.msra.mxu0 %v1307
    %1805 = vmatpush.msra.mxu0 %v1303
    %1806 = vmatpush.msra.mxu0 %v1299
    %1807 = vmatpush.msra.mxu0 %v1295
    %1808 = vmatpush.msra.mxu0 %v1291
    %1809 = vmatpush.msra.mxu0 %v1287
    %1810 = vmatpush.msra.mxu0 %v1283
    %1811 = vmatpush.msra.mxu0 %v1279
    %1812 = vmatpush.msra.mxu0 %v1275
    %1813 = vmatmul.f32.gmra.mxu0 %v1267
    %v1814 = vpop.f32.mrf.mxu0
    %v1815 = vadd.f32 %v1789, %v1814
    %1816 = vdwg.mxu0
    %1817 = vmatpush.msra.mxu0 %v1399
    %1818 = vmatpush.msra.mxu0 %v1395
    %1819 = vmatpush.msra.mxu0 %v1391
    %1820 = vmatpush.msra.mxu0 %v1387
    %1821 = vmatpush.msra.mxu0 %v1383
    %1822 = vmatpush.msra.mxu0 %v1379
    %1823 = vmatpush.msra.mxu0 %v1375
    %1824 = vmatpush.msra.mxu0 %v1371
    %1825 = vmatpush.msra.mxu0 %v1367
    %1826 = vmatpush.msra.mxu0 %v1363
    %1827 = vmatpush.msra.mxu0 %v1359
    %1828 = vmatpush.msra.mxu0 %v1355
    %1829 = vmatpush.msra.mxu0 %v1351
    %1830 = vmatpush.msra.mxu0 %v1347
    %1831 = vmatpush.msra.mxu0 %v1343
    %1832 = vmatpush.msra.mxu0 %v1339
    %1833 = vmatmul.f32.gmra.mxu0 %v1268
    %v1834 = vpop.f32.mrf.mxu0
    %v1835 = vadd.f32 %v1815, %v1834
    %1836 = vdwg.mxu0
    %1837 = vmatpush.msra.mxu0 %v1463
    %1838 = vmatpush.msra.mxu0 %v1459
    %1839 = vmatpush.msra.mxu0 %v1455
    %1840 = vmatpush.msra.mxu0 %v1451
    %1841 = vmatpush.msra.mxu0 %v1447
    %1842 = vmatpush.msra.mxu0 %v1443
    %1843 = vmatpush.msra.mxu0 %v1439
    %1844 = vmatpush.msra.mxu0 %v1435
    %1845 = vmatpush.msra.mxu0 %v1431
    %1846 = vmatpush.msra.mxu0 %v1427
    %1847 = vmatpush.msra.mxu0 %v1423
    %1848 = vmatpush.msra.mxu0 %v1419
    %1849 = vmatpush.msra.mxu0 %v1415
    %1850 = vmatpush.msra.mxu0 %v1411
    %1851 = vmatpush.msra.mxu0 %v1407
    %1852 = vmatpush.msra.mxu0 %v1403
    %1853 = vmatmul.f32.gmra.mxu0 %v1269
    %v1854 = vpop.f32.mrf.mxu0
    %v1855 = vadd.f32 %v1835, %v1854
    %1856 = vdwg.mxu0
    %1857 = vmatpush.msra.mxu0 %v1527
    %1858 = vmatpush.msra.mxu0 %v1523
    %1859 = vmatpush.msra.mxu0 %v1519
    %1860 = vmatpush.msra.mxu0 %v1515
    %1861 = vmatpush.msra.mxu0 %v1511
    %1862 = vmatpush.msra.mxu0 %v1507
    %1863 = vmatpush.msra.mxu0 %v1503
    %1864 = vmatpush.msra.mxu0 %v1499
    %1865 = vmatpush.msra.mxu0 %v1495
    %1866 = vmatpush.msra.mxu0 %v1491
    %1867 = vmatpush.msra.mxu0 %v1487
    %1868 = vmatpush.msra.mxu0 %v1483
    %1869 = vmatpush.msra.mxu0 %v1479
    %1870 = vmatpush.msra.mxu0 %v1475
    %1871 = vmatpush.msra.mxu0 %v1471
    %1872 = vmatpush.msra.mxu0 %v1467
    %1873 = vmatmul.f32.gmra.mxu0 %v1270
    %v1874 = vpop.f32.mrf.mxu0
    %v1875 = vadd.f32 %v1855, %v1874
    %1876 = vdwg.mxu0
    %1877 = vmatpush.msra.mxu0 %v1591
    %1878 = vmatpush.msra.mxu0 %v1587
    %1879 = vmatpush.msra.mxu0 %v1583
    %1880 = vmatpush.msra.mxu0 %v1579
    %1881 = vmatpush.msra.mxu0 %v1575
    %1882 = vmatpush.msra.mxu0 %v1571
    %1883 = vmatpush.msra.mxu0 %v1567
    %1884 = vmatpush.msra.mxu0 %v1563
    %1885 = vmatpush.msra.mxu0 %v1559
    %1886 = vmatpush.msra.mxu0 %v1555
    %1887 = vmatpush.msra.mxu0 %v1551
    %1888 = vmatpush.msra.mxu0 %v1547
    %1889 = vmatpush.msra.mxu0 %v1543
    %1890 = vmatpush.msra.mxu0 %v1539
    %1891 = vmatpush.msra.mxu0 %v1535
    %1892 = vmatpush.msra.mxu0 %v1531
    %1893 = vmatmul.f32.gmra.mxu0 %v1271
    %v1894 = vpop.f32.mrf.mxu0
    %v1895 = vadd.f32 %v1875, %v1894
    %1896 = vdwg.mxu0
    %1897 = vmatpush.msra.mxu0 %v1655
    %1898 = vmatpush.msra.mxu0 %v1651
    %1899 = vmatpush.msra.mxu0 %v1647
    %1900 = vmatpush.msra.mxu0 %v1643
    %1901 = vmatpush.msra.mxu0 %v1639
    %1902 = vmatpush.msra.mxu0 %v1635
    %1903 = vmatpush.msra.mxu0 %v1631
    %1904 = vmatpush.msra.mxu0 %v1627
    %1905 = vmatpush.msra.mxu0 %v1623
    %1906 = vmatpush.msra.mxu0 %v1619
    %1907 = vmatpush.msra.mxu0 %v1615
    %1908 = vmatpush.msra.mxu0 %v1611
    %1909 = vmatpush.msra.mxu0 %v1607
    %1910 = vmatpush.msra.mxu0 %v1603
    %1911 = vmatpush.msra.mxu0 %v1599
    %1912 = vmatpush.msra.mxu0 %v1595
    %1913 = vmatmul.f32.gmra.mxu0 %v1272
    %v1914 = vpop.f32.mrf.mxu0
    %v1915 = vadd.f32 %v1895, %v1914
    %1916 = vdwg.mxu0
    %1917 = vmatpush.msra.mxu0 %v1719
    %1918 = vmatpush.msra.mxu0 %v1715
    %1919 = vmatpush.msra.mxu0 %v1711
    %1920 = vmatpush.msra.mxu0 %v1707
    %1921 = vmatpush.msra.mxu0 %v1703
    %1922 = vmatpush.msra.mxu0 %v1699
    %1923 = vmatpush.msra.mxu0 %v1695
    %1924 = vmatpush.msra.mxu0 %v1691
    %1925 = vmatpush.msra.mxu0 %v1687
    %1926 = vmatpush.msra.mxu0 %v1683
    %1927 = vmatpush.msra.mxu0 %v1679
    %1928 = vmatpush.msra.mxu0 %v1675
    %1929 = vmatpush.msra.mxu0 %v1671
    %1930 = vmatpush.msra.mxu0 %v1667
    %1931 = vmatpush.msra.mxu0 %v1663
    %1932 = vmatpush.msra.mxu0 %v1659
    %1933 = vmatmul.f32.gmra.mxu0 %v1273
    %v1934 = vpop.f32.mrf.mxu0
    %v1935 = vadd.f32 %v1915, %v1934
    %1936 = vdwg.mxu0
    %1937 = vmatpush.msra.mxu0 %v1783
    %1938 = vmatpush.msra.mxu0 %v1779
    %1939 = vmatpush.msra.mxu0 %v1775
    %1940 = vmatpush.msra.mxu0 %v1771
    %1941 = vmatpush.msra.mxu0 %v1767
    %1942 = vmatpush.msra.mxu0 %v1763
    %1943 = vmatpush.msra.mxu0 %v1759
    %1944 = vmatpush.msra.mxu0 %v1755
    %1945 = vmatpush.msra.mxu0 %v1751
    %1946 = vmatpush.msra.mxu0 %v1747
    %1947 = vmatpush.msra.mxu0 %v1743
    %1948 = vmatpush.msra.mxu0 %v1739
    %1949 = vmatpush.msra.mxu0 %v1735
    %1950 = vmatpush.msra.mxu0 %v1731
    %1951 = vmatpush.msra.mxu0 %v1727
    %1952 = vmatpush.msra.mxu0 %v1723
    %1953 = vmatmul.f32.gmra.mxu0 %v1274
    %v1954 = vpop.f32.mrf.mxu0
    %v1955 = vadd.f32 %v1935, %v1954
    %1956 = vdwg.mxu0
    %1957 = vmatpush.msra.mxu0 %v1336
    %1958 = vmatpush.msra.mxu0 %v1332
    %1959 = vmatpush.msra.mxu0 %v1328
    %1960 = vmatpush.msra.mxu0 %v1324
    %1961 = vmatpush.msra.mxu0 %v1320
    %1962 = vmatpush.msra.mxu0 %v1316
    %1963 = vmatpush.msra.mxu0 %v1312
    %1964 = vmatpush.msra.mxu0 %v1308
    %1965 = vmatpush.msra.mxu0 %v1304
    %1966 = vmatpush.msra.mxu0 %v1300
    %1967 = vmatpush.msra.mxu0 %v1296
    %1968 = vmatpush.msra.mxu0 %v1292
    %1969 = vmatpush.msra.mxu0 %v1288
    %1970 = vmatpush.msra.mxu0 %v1284
    %1971 = vmatpush.msra.mxu0 %v1280
    %1972 = vmatpush.msra.mxu0 %v1276
    %1973 = vmatmul.f32.gmra.mxu0 %v1267
    %v1974 = vpop.f32.mrf.mxu0
    %v1975 = vadd.f32 %v1790, %v1974
    %1976 = vdwg.mxu0
    %1977 = vmatpush.msra.mxu0 %v1400
    %1978 = vmatpush.msra.mxu0 %v1396
    %1979 = vmatpush.msra.mxu0 %v1392
    %1980 = vmatpush.msra.mxu0 %v1388
    %1981 = vmatpush.msra.mxu0 %v1384
    %1982 = vmatpush.msra.mxu0 %v1380
    %1983 = vmatpush.msra.mxu0 %v1376
    %1984 = vmatpush.msra.mxu0 %v1372
    %1985 = vmatpush.msra.mxu0 %v1368
    %1986 = vmatpush.msra.mxu0 %v1364
    %1987 = vmatpush.msra.mxu0 %v1360
    %1988 = vmatpush.msra.mxu0 %v1356
    %1989 = vmatpush.msra.mxu0 %v1352
    %1990 = vmatpush.msra.mxu0 %v1348
    %1991 = vmatpush.msra.mxu0 %v1344
    %1992 = vmatpush.msra.mxu0 %v1340
    %1993 = vmatmul.f32.gmra.mxu0 %v1268
    %v1994 = vpop.f32.mrf.mxu0
    %v1995 = vadd.f32 %v1975, %v1994
    %1996 = vdwg.mxu0
    %1997 = vmatpush.msra.mxu0 %v1464
    %1998 = vmatpush.msra.mxu0 %v1460
    %1999 = vmatpush.msra.mxu0 %v1456
    %2000 = vmatpush.msra.mxu0 %v1452
    %2001 = vmatpush.msra.mxu0 %v1448
    %2002 = vmatpush.msra.mxu0 %v1444
    %2003 = vmatpush.msra.mxu0 %v1440
    %2004 = vmatpush.msra.mxu0 %v1436
    %2005 = vmatpush.msra.mxu0 %v1432
    %2006 = vmatpush.msra.mxu0 %v1428
    %2007 = vmatpush.msra.mxu0 %v1424
    %2008 = vmatpush.msra.mxu0 %v1420
    %2009 = vmatpush.msra.mxu0 %v1416
    %2010 = vmatpush.msra.mxu0 %v1412
    %2011 = vmatpush.msra.mxu0 %v1408
    %2012 = vmatpush.msra.mxu0 %v1404
    %2013 = vmatmul.f32.gmra.mxu0 %v1269
    %v2014 = vpop.f32.mrf.mxu0
    %v2015 = vadd.f32 %v1995, %v2014
    %2016 = vdwg.mxu0
    %2017 = vmatpush.msra.mxu0 %v1528
    %2018 = vmatpush.msra.mxu0 %v1524
    %2019 = vmatpush.msra.mxu0 %v1520
    %2020 = vmatpush.msra.mxu0 %v1516
    %2021 = vmatpush.msra.mxu0 %v1512
    %2022 = vmatpush.msra.mxu0 %v1508
    %2023 = vmatpush.msra.mxu0 %v1504
    %2024 = vmatpush.msra.mxu0 %v1500
    %2025 = vmatpush.msra.mxu0 %v1496
    %2026 = vmatpush.msra.mxu0 %v1492
    %2027 = vmatpush.msra.mxu0 %v1488
    %2028 = vmatpush.msra.mxu0 %v1484
    %2029 = vmatpush.msra.mxu0 %v1480
    %2030 = vmatpush.msra.mxu0 %v1476
    %2031 = vmatpush.msra.mxu0 %v1472
    %2032 = vmatpush.msra.mxu0 %v1468
    %2033 = vmatmul.f32.gmra.mxu0 %v1270
    %v2034 = vpop.f32.mrf.mxu0
    %v2035 = vadd.f32 %v2015, %v2034
    %2036 = vdwg.mxu0
    %2037 = vmatpush.msra.mxu0 %v1592
    %2038 = vmatpush.msra.mxu0 %v1588
    %2039 = vmatpush.msra.mxu0 %v1584
    %2040 = vmatpush.msra.mxu0 %v1580
    %2041 = vmatpush.msra.mxu0 %v1576
    %2042 = vmatpush.msra.mxu0 %v1572
    %2043 = vmatpush.msra.mxu0 %v1568
    %2044 = vmatpush.msra.mxu0 %v1564
    %2045 = vmatpush.msra.mxu0 %v1560
    %2046 = vmatpush.msra.mxu0 %v1556
    %2047 = vmatpush.msra.mxu0 %v1552
    %2048 = vmatpush.msra.mxu0 %v1548
    %2049 = vmatpush.msra.mxu0 %v1544
    %2050 = vmatpush.msra.mxu0 %v1540
    %2051 = vmatpush.msra.mxu0 %v1536
    %2052 = vmatpush.msra.mxu0 %v1532
    %2053 = vmatmul.f32.gmra.mxu0 %v1271
    %v2054 = vpop.f32.mrf.mxu0
    %v2055 = vadd.f32 %v2035, %v2054
    %2056 = vdwg.mxu0
    %2057 = vmatpush.msra.mxu0 %v1656
    %2058 = vmatpush.msra.mxu0 %v1652
    %2059 = vmatpush.msra.mxu0 %v1648
    %2060 = vmatpush.msra.mxu0 %v1644
    %2061 = vmatpush.msra.mxu0 %v1640
    %2062 = vmatpush.msra.mxu0 %v1636
    %2063 = vmatpush.msra.mxu0 %v1632
    %2064 = vmatpush.msra.mxu0 %v1628
    %2065 = vmatpush.msra.mxu0 %v1624
    %2066 = vmatpush.msra.mxu0 %v1620
    %2067 = vmatpush.msra.mxu0 %v1616
    %2068 = vmatpush.msra.mxu0 %v1612
    %2069 = vmatpush.msra.mxu0 %v1608
    %2070 = vmatpush.msra.mxu0 %v1604
    %2071 = vmatpush.msra.mxu0 %v1600
    %2072 = vmatpush.msra.mxu0 %v1596
    %2073 = vmatmul.f32.gmra.mxu0 %v1272
    %v2074 = vpop.f32.mrf.mxu0
    %v2075 = vadd.f32 %v2055, %v2074
    %2076 = vdwg.mxu0
    %2077 = vmatpush.msra.mxu0 %v1720
    %2078 = vmatpush.msra.mxu0 %v1716
    %2079 = vmatpush.msra.mxu0 %v1712
    %2080 = vmatpush.msra.mxu0 %v1708
    %2081 = vmatpush.msra.mxu0 %v1704
    %2082 = vmatpush.msra.mxu0 %v1700
    %2083 = vmatpush.msra.mxu0 %v1696
    %2084 = vmatpush.msra.mxu0 %v1692
    %2085 = vmatpush.msra.mxu0 %v1688
    %2086 = vmatpush.msra.mxu0 %v1684
    %2087 = vmatpush.msra.mxu0 %v1680
    %2088 = vmatpush.msra.mxu0 %v1676
    %2089 = vmatpush.msra.mxu0 %v1672
    %2090 = vmatpush.msra.mxu0 %v1668
    %2091 = vmatpush.msra.mxu0 %v1664
    %2092 = vmatpush.msra.mxu0 %v1660
    %2093 = vmatmul.f32.gmra.mxu0 %v1273
    %v2094 = vpop.f32.mrf.mxu0
    %v2095 = vadd.f32 %v2075, %v2094
    %2096 = vdwg.mxu0
    %2097 = vmatpush.msra.mxu0 %v1784
    %2098 = vmatpush.msra.mxu0 %v1780
    %2099 = vmatpush.msra.mxu0 %v1776
    %2100 = vmatpush.msra.mxu0 %v1772
    %2101 = vmatpush.msra.mxu0 %v1768
    %2102 = vmatpush.msra.mxu0 %v1764
    %2103 = vmatpush.msra.mxu0 %v1760
    %2104 = vmatpush.msra.mxu0 %v1756
    %2105 = vmatpush.msra.mxu0 %v1752
    %2106 = vmatpush.msra.mxu0 %v1748
    %2107 = vmatpush.msra.mxu0 %v1744
    %2108 = vmatpush.msra.mxu0 %v1740
    %2109 = vmatpush.msra.mxu0 %v1736
    %2110 = vmatpush.msra.mxu0 %v1732
    %2111 = vmatpush.msra.mxu0 %v1728
    %2112 = vmatpush.msra.mxu0 %v1724
    %2113 = vmatmul.f32.gmra.mxu0 %v1274
    %v2114 = vpop.f32.mrf.mxu0
    %v2115 = vadd.f32 %v2095, %v2114
    %2116 = vdwg.mxu0
    %2117 = vmatpush.msra.mxu0 %v1337
    %2118 = vmatpush.msra.mxu0 %v1333
    %2119 = vmatpush.msra.mxu0 %v1329
    %2120 = vmatpush.msra.mxu0 %v1325
    %2121 = vmatpush.msra.mxu0 %v1321
    %2122 = vmatpush.msra.mxu0 %v1317
    %2123 = vmatpush.msra.mxu0 %v1313
    %2124 = vmatpush.msra.mxu0 %v1309
    %2125 = vmatpush.msra.mxu0 %v1305
    %2126 = vmatpush.msra.mxu0 %v1301
    %2127 = vmatpush.msra.mxu0 %v1297
    %2128 = vmatpush.msra.mxu0 %v1293
    %2129 = vmatpush.msra.mxu0 %v1289
    %2130 = vmatpush.msra.mxu0 %v1285
    %2131 = vmatpush.msra.mxu0 %v1281
    %2132 = vmatpush.msra.mxu0 %v1277
    %2133 = vmatmul.f32.gmra.mxu0 %v1267
    %v2134 = vpop.f32.mrf.mxu0
    %v2135 = vadd.f32 %v1791, %v2134
    %2136 = vdwg.mxu0
    %2137 = vmatpush.msra.mxu0 %v1401
    %2138 = vmatpush.msra.mxu0 %v1397
    %2139 = vmatpush.msra.mxu0 %v1393
    %2140 = vmatpush.msra.mxu0 %v1389
    %2141 = vmatpush.msra.mxu0 %v1385
    %2142 = vmatpush.msra.mxu0 %v1381
    %2143 = vmatpush.msra.mxu0 %v1377
    %2144 = vmatpush.msra.mxu0 %v1373
    %2145 = vmatpush.msra.mxu0 %v1369
    %2146 = vmatpush.msra.mxu0 %v1365
    %2147 = vmatpush.msra.mxu0 %v1361
    %2148 = vmatpush.msra.mxu0 %v1357
    %2149 = vmatpush.msra.mxu0 %v1353
    %2150 = vmatpush.msra.mxu0 %v1349
    %2151 = vmatpush.msra.mxu0 %v1345
    %2152 = vmatpush.msra.mxu0 %v1341
    %2153 = vmatmul.f32.gmra.mxu0 %v1268
    %v2154 = vpop.f32.mrf.mxu0
    %v2155 = vadd.f32 %v2135, %v2154
    %2156 = vdwg.mxu0
    %2157 = vmatpush.msra.mxu0 %v1465
    %2158 = vmatpush.msra.mxu0 %v1461
    %2159 = vmatpush.msra.mxu0 %v1457
    %2160 = vmatpush.msra.mxu0 %v1453
    %2161 = vmatpush.msra.mxu0 %v1449
    %2162 = vmatpush.msra.mxu0 %v1445
    %2163 = vmatpush.msra.mxu0 %v1441
    %2164 = vmatpush.msra.mxu0 %v1437
    %2165 = vmatpush.msra.mxu0 %v1433
    %2166 = vmatpush.msra.mxu0 %v1429
    %2167 = vmatpush.msra.mxu0 %v1425
    %2168 = vmatpush.msra.mxu0 %v1421
    %2169 = vmatpush.msra.mxu0 %v1417
    %2170 = vmatpush.msra.mxu0 %v1413
    %2171 = vmatpush.msra.mxu0 %v1409
    %2172 = vmatpush.msra.mxu0 %v1405
    %2173 = vmatmul.f32.gmra.mxu0 %v1269
    %v2174 = vpop.f32.mrf.mxu0
    %v2175 = vadd.f32 %v2155, %v2174
    %2176 = vdwg.mxu0
    %2177 = vmatpush.msra.mxu0 %v1529
    %2178 = vmatpush.msra.mxu0 %v1525
    %2179 = vmatpush.msra.mxu0 %v1521
    %2180 = vmatpush.msra.mxu0 %v1517
    %2181 = vmatpush.msra.mxu0 %v1513
    %2182 = vmatpush.msra.mxu0 %v1509
    %2183 = vmatpush.msra.mxu0 %v1505
    %2184 = vmatpush.msra.mxu0 %v1501
    %2185 = vmatpush.msra.mxu0 %v1497
    %2186 = vmatpush.msra.mxu0 %v1493
    %2187 = vmatpush.msra.mxu0 %v1489
    %2188 = vmatpush.msra.mxu0 %v1485
    %2189 = vmatpush.msra.mxu0 %v1481
    %2190 = vmatpush.msra.mxu0 %v1477
    %2191 = vmatpush.msra.mxu0 %v1473
    %2192 = vmatpush.msra.mxu0 %v1469
    %2193 = vmatmul.f32.gmra.mxu0 %v1270
    %v2194 = vpop.f32.mrf.mxu0
    %v2195 = vadd.f32 %v2175, %v2194
    %2196 = vdwg.mxu0
    %2197 = vmatpush.msra.mxu0 %v1593
    %2198 = vmatpush.msra.mxu0 %v1589
    %2199 = vmatpush.msra.mxu0 %v1585
    %2200 = vmatpush.msra.mxu0 %v1581
    %2201 = vmatpush.msra.mxu0 %v1577
    %2202 = vmatpush.msra.mxu0 %v1573
    %2203 = vmatpush.msra.mxu0 %v1569
    %2204 = vmatpush.msra.mxu0 %v1565
    %2205 = vmatpush.msra.mxu0 %v1561
    %2206 = vmatpush.msra.mxu0 %v1557
    %2207 = vmatpush.msra.mxu0 %v1553
    %2208 = vmatpush.msra.mxu0 %v1549
    %2209 = vmatpush.msra.mxu0 %v1545
    %2210 = vmatpush.msra.mxu0 %v1541
    %2211 = vmatpush.msra.mxu0 %v1537
    %2212 = vmatpush.msra.mxu0 %v1533
    %2213 = vmatmul.f32.gmra.mxu0 %v1271
    %v2214 = vpop.f32.mrf.mxu0
    %v2215 = vadd.f32 %v2195, %v2214
    %2216 = vdwg.mxu0
    %2217 = vmatpush.msra.mxu0 %v1657
    %2218 = vmatpush.msra.mxu0 %v1653
    %2219 = vmatpush.msra.mxu0 %v1649
    %2220 = vmatpush.msra.mxu0 %v1645
    %2221 = vmatpush.msra.mxu0 %v1641
    %2222 = vmatpush.msra.mxu0 %v1637
    %2223 = vmatpush.msra.mxu0 %v1633
    %2224 = vmatpush.msra.mxu0 %v1629
    %2225 = vmatpush.msra.mxu0 %v1625
    %2226 = vmatpush.msra.mxu0 %v1621
    %2227 = vmatpush.msra.mxu0 %v1617
    %2228 = vmatpush.msra.mxu0 %v1613
    %2229 = vmatpush.msra.mxu0 %v1609
    %2230 = vmatpush.msra.mxu0 %v1605
    %2231 = vmatpush.msra.mxu0 %v1601
    %2232 = vmatpush.msra.mxu0 %v1597
    %2233 = vmatmul.f32.gmra.mxu0 %v1272
    %v2234 = vpop.f32.mrf.mxu0
    %v2235 = vadd.f32 %v2215, %v2234
    %2236 = vdwg.mxu0
    %2237 = vmatpush.msra.mxu0 %v1721
    %2238 = vmatpush.msra.mxu0 %v1717
    %2239 = vmatpush.msra.mxu0 %v1713
    %2240 = vmatpush.msra.mxu0 %v1709
    %2241 = vmatpush.msra.mxu0 %v1705
    %2242 = vmatpush.msra.mxu0 %v1701
    %2243 = vmatpush.msra.mxu0 %v1697
    %2244 = vmatpush.msra.mxu0 %v1693
    %2245 = vmatpush.msra.mxu0 %v1689
    %2246 = vmatpush.msra.mxu0 %v1685
    %2247 = vmatpush.msra.mxu0 %v1681
    %2248 = vmatpush.msra.mxu0 %v1677
    %2249 = vmatpush.msra.mxu0 %v1673
    %2250 = vmatpush.msra.mxu0 %v1669
    %2251 = vmatpush.msra.mxu0 %v1665
    %2252 = vmatpush.msra.mxu0 %v1661
    %2253 = vmatmul.f32.gmra.mxu0 %v1273
    %v2254 = vpop.f32.mrf.mxu0
    %v2255 = vadd.f32 %v2235, %v2254
    %2256 = vdwg.mxu0
    %2257 = vmatpush.msra.mxu0 %v1785
    %2258 = vmatpush.msra.mxu0 %v1781
    %2259 = vmatpush.msra.mxu0 %v1777
    %2260 = vmatpush.msra.mxu0 %v1773
    %2261 = vmatpush.msra.mxu0 %v1769
    %2262 = vmatpush.msra.mxu0 %v1765
    %2263 = vmatpush.msra.mxu0 %v1761
    %2264 = vmatpush.msra.mxu0 %v1757
    %2265 = vmatpush.msra.mxu0 %v1753
    %2266 = vmatpush.msra.mxu0 %v1749
    %2267 = vmatpush.msra.mxu0 %v1745
    %2268 = vmatpush.msra.mxu0 %v1741
    %2269 = vmatpush.msra.mxu0 %v1737
    %2270 = vmatpush.msra.mxu0 %v1733
    %2271 = vmatpush.msra.mxu0 %v1729
    %2272 = vmatpush.msra.mxu0 %v1725
    %2273 = vmatmul.f32.gmra.mxu0 %v1274
    %v2274 = vpop.f32.mrf.mxu0
    %v2275 = vadd.f32 %v2255, %v2274
    %2276 = vdwg.mxu0
    %2277 = vmatpush.msra.mxu0 %v1338
    %2278 = vmatpush.msra.mxu0 %v1334
    %2279 = vmatpush.msra.mxu0 %v1330
    %2280 = vmatpush.msra.mxu0 %v1326
    %2281 = vmatpush.msra.mxu0 %v1322
    %2282 = vmatpush.msra.mxu0 %v1318
    %2283 = vmatpush.msra.mxu0 %v1314
    %2284 = vmatpush.msra.mxu0 %v1310
    %2285 = vmatpush.msra.mxu0 %v1306
    %2286 = vmatpush.msra.mxu0 %v1302
    %2287 = vmatpush.msra.mxu0 %v1298
    %2288 = vmatpush.msra.mxu0 %v1294
    %2289 = vmatpush.msra.mxu0 %v1290
    %2290 = vmatpush.msra.mxu0 %v1286
    %2291 = vmatpush.msra.mxu0 %v1282
    %2292 = vmatpush.msra.mxu0 %v1278
    %2293 = vmatmul.f32.gmra.mxu0 %v1267
    %v2294 = vpop.f32.mrf.mxu0
    %v2295 = vadd.f32 %v1792, %v2294
    %2296 = vdwg.mxu0
    %2297 = vmatpush.msra.mxu0 %v1402
    %2298 = vmatpush.msra.mxu0 %v1398
    %2299 = vmatpush.msra.mxu0 %v1394
    %2300 = vmatpush.msra.mxu0 %v1390
    %2301 = vmatpush.msra.mxu0 %v1386
    %2302 = vmatpush.msra.mxu0 %v1382
    %2303 = vmatpush.msra.mxu0 %v1378
    %2304 = vmatpush.msra.mxu0 %v1374
    %2305 = vmatpush.msra.mxu0 %v1370
    %2306 = vmatpush.msra.mxu0 %v1366
    %2307 = vmatpush.msra.mxu0 %v1362
    %2308 = vmatpush.msra.mxu0 %v1358
    %2309 = vmatpush.msra.mxu0 %v1354
    %2310 = vmatpush.msra.mxu0 %v1350
    %2311 = vmatpush.msra.mxu0 %v1346
    %2312 = vmatpush.msra.mxu0 %v1342
    %2313 = vmatmul.f32.gmra.mxu0 %v1268
    %v2314 = vpop.f32.mrf.mxu0
    %v2315 = vadd.f32 %v2295, %v2314
    %2316 = vdwg.mxu0
    %2317 = vmatpush.msra.mxu0 %v1466
    %2318 = vmatpush.msra.mxu0 %v1462
    %2319 = vmatpush.msra.mxu0 %v1458
    %2320 = vmatpush.msra.mxu0 %v1454
    %2321 = vmatpush.msra.mxu0 %v1450
    %2322 = vmatpush.msra.mxu0 %v1446
    %2323 = vmatpush.msra.mxu0 %v1442
    %2324 = vmatpush.msra.mxu0 %v1438
    %2325 = vmatpush.msra.mxu0 %v1434
    %2326 = vmatpush.msra.mxu0 %v1430
    %2327 = vmatpush.msra.mxu0 %v1426
    %2328 = vmatpush.msra.mxu0 %v1422
    %2329 = vmatpush.msra.mxu0 %v1418
    %2330 = vmatpush.msra.mxu0 %v1414
    %2331 = vmatpush.msra.mxu0 %v1410
    %2332 = vmatpush.msra.mxu0 %v1406
    %2333 = vmatmul.f32.gmra.mxu0 %v1269
    %v2334 = vpop.f32.mrf.mxu0
    %v2335 = vadd.f32 %v2315, %v2334
    %2336 = vdwg.mxu0
    %2337 = vmatpush.msra.mxu0 %v1530
    %2338 = vmatpush.msra.mxu0 %v1526
    %2339 = vmatpush.msra.mxu0 %v1522
    %2340 = vmatpush.msra.mxu0 %v1518
    %2341 = vmatpush.msra.mxu0 %v1514
    %2342 = vmatpush.msra.mxu0 %v1510
    %2343 = vmatpush.msra.mxu0 %v1506
    %2344 = vmatpush.msra.mxu0 %v1502
    %2345 = vmatpush.msra.mxu0 %v1498
    %2346 = vmatpush.msra.mxu0 %v1494
    %2347 = vmatpush.msra.mxu0 %v1490
    %2348 = vmatpush.msra.mxu0 %v1486
    %2349 = vmatpush.msra.mxu0 %v1482
    %2350 = vmatpush.msra.mxu0 %v1478
    %2351 = vmatpush.msra.mxu0 %v1474
    %2352 = vmatpush.msra.mxu0 %v1470
    %2353 = vmatmul.f32.gmra.mxu0 %v1270
    %v2354 = vpop.f32.mrf.mxu0
    %v2355 = vadd.f32 %v2335, %v2354
    %2356 = vdwg.mxu0
    %2357 = vmatpush.msra.mxu0 %v1594
    %2358 = vmatpush.msra.mxu0 %v1590
    %2359 = vmatpush.msra.mxu0 %v1586
    %2360 = vmatpush.msra.mxu0 %v1582
    %2361 = vmatpush.msra.mxu0 %v1578
    %2362 = vmatpush.msra.mxu0 %v1574
    %2363 = vmatpush.msra.mxu0 %v1570
    %2364 = vmatpush.msra.mxu0 %v1566
    %2365 = vmatpush.msra.mxu0 %v1562
    %2366 = vmatpush.msra.mxu0 %v1558
    %2367 = vmatpush.msra.mxu0 %v1554
    %2368 = vmatpush.msra.mxu0 %v1550
    %2369 = vmatpush.msra.mxu0 %v1546
    %2370 = vmatpush.msra.mxu0 %v1542
    %2371 = vmatpush.msra.mxu0 %v1538
    %2372 = vmatpush.msra.mxu0 %v1534
    %2373 = vmatmul.f32.gmra.mxu0 %v1271
    %v2374 = vpop.f32.mrf.mxu0
    %v2375 = vadd.f32 %v2355, %v2374
    %2376 = vdwg.mxu0
    %2377 = vmatpush.msra.mxu0 %v1658
    %2378 = vmatpush.msra.mxu0 %v1654
    %2379 = vmatpush.msra.mxu0 %v1650
    %2380 = vmatpush.msra.mxu0 %v1646
    %2381 = vmatpush.msra.mxu0 %v1642
    %2382 = vmatpush.msra.mxu0 %v1638
    %2383 = vmatpush.msra.mxu0 %v1634
    %2384 = vmatpush.msra.mxu0 %v1630
    %2385 = vmatpush.msra.mxu0 %v1626
    %2386 = vmatpush.msra.mxu0 %v1622
    %2387 = vmatpush.msra.mxu0 %v1618
    %2388 = vmatpush.msra.mxu0 %v1614
    %2389 = vmatpush.msra.mxu0 %v1610
    %2390 = vmatpush.msra.mxu0 %v1606
    %2391 = vmatpush.msra.mxu0 %v1602
    %2392 = vmatpush.msra.mxu0 %v1598
    %2393 = vmatmul.f32.gmra.mxu0 %v1272
    %v2394 = vpop.f32.mrf.mxu0
    %v2395 = vadd.f32 %v2375, %v2394
    %2396 = vdwg.mxu0
    %2397 = vmatpush.msra.mxu0 %v1722
    %2398 = vmatpush.msra.mxu0 %v1718
    %2399 = vmatpush.msra.mxu0 %v1714
    %2400 = vmatpush.msra.mxu0 %v1710
    %2401 = vmatpush.msra.mxu0 %v1706
    %2402 = vmatpush.msra.mxu0 %v1702
    %2403 = vmatpush.msra.mxu0 %v1698
    %2404 = vmatpush.msra.mxu0 %v1694
    %2405 = vmatpush.msra.mxu0 %v1690
    %2406 = vmatpush.msra.mxu0 %v1686
    %2407 = vmatpush.msra.mxu0 %v1682
    %2408 = vmatpush.msra.mxu0 %v1678
    %2409 = vmatpush.msra.mxu0 %v1674
    %2410 = vmatpush.msra.mxu0 %v1670
    %2411 = vmatpush.msra.mxu0 %v1666
    %2412 = vmatpush.msra.mxu0 %v1662
    %2413 = vmatmul.f32.gmra.mxu0 %v1273
    %v2414 = vpop.f32.mrf.mxu0
    %v2415 = vadd.f32 %v2395, %v2414
    %2416 = vdwg.mxu0
    %2417 = vmatpush.msra.mxu0 %v1786
    %2418 = vmatpush.msra.mxu0 %v1782
    %2419 = vmatpush.msra.mxu0 %v1778
    %2420 = vmatpush.msra.mxu0 %v1774
    %2421 = vmatpush.msra.mxu0 %v1770
    %2422 = vmatpush.msra.mxu0 %v1766
    %2423 = vmatpush.msra.mxu0 %v1762
    %2424 = vmatpush.msra.mxu0 %v1758
    %2425 = vmatpush.msra.mxu0 %v1754
    %2426 = vmatpush.msra.mxu0 %v1750
    %2427 = vmatpush.msra.mxu0 %v1746
    %2428 = vmatpush.msra.mxu0 %v1742
    %2429 = vmatpush.msra.mxu0 %v1738
    %2430 = vmatpush.msra.mxu0 %v1734
    %2431 = vmatpush.msra.mxu0 %v1730
    %2432 = vmatpush.msra.mxu0 %v1726
    %2433 = vmatmul.f32.gmra.mxu0 %v1274
    %v2434 = vpop.f32.mrf.mxu0
    %v2435 = vadd.f32 %v2415, %v2434
    %2436 = vdwg.mxu0
    %2437 = vst [vmem:[#allocation11] sm:$0xff] %v1955
    %2438 = vst [vmem:[#allocation11 + $0x8] sm:$0xff] %v2115
    %2439 = vst [vmem:[#allocation11 + $0x10] sm:$0xff] %v2275
    %2440 = vst [vmem:[#allocation11 + $0x18] sm:$0xff] %v2435
    // Predicated region
    $region42: #{tpu_custom_call.1} parent=1 // pred_check
      _
    $region43: #{tpu_custom_call.1} parent=1 // pred_check_branch
      %2442 = sbr.rel (0) target = $region45
    $region44: #{tpu_custom_call.1} parent=1 // pred_region
      %2444 = vsyncadd [#allocation4], 0
      %s2446 = sshll.u32 [#allocation11], 4
      %s2447 = int_to_ptr.vmem [resolvable:$true] %s2446
      %s2448 = sshll.u32 %s5, 4
      %s2449 = int_to_ptr.hbm [resolvable:$true] %s2448
      %2451 = dma.vmem_to_hbm [thread:$0]  %s2447, 512, %s2449, [#allocation4]
    $region45: #{tpu_custom_call.1} parent=1 // pred_fallthru
      _
    // Predicated region
    $region46: #{tpu_custom_call.1} parent=1 // pred_check
      _
    $region47: #{tpu_custom_call.1} parent=1 // pred_check_branch
      %2453 = sbr.rel (0) target = $region49
    $region48: #{tpu_custom_call.1} parent=1 // pred_region
      %2455 = dma.done [#allocation4], 512
    $region49: #{tpu_custom_call.1} parent=1 // pred_fallthru
      _
    %2456 = vsyncpa [#allocation3], 1
    %2457 = vsyncpa [#allocation6], 1
    %2458 = vsyncpa [#allocation9], 1
    %2459 = vsyncpa [#allocation4], 1

</llo_original>
